<compile_context>
chip_gen: v7x
topology: tpu7x:2x2x1
jax: 0.10.0
libtpu: 0.0.40
codegen_flags: <defaults>
</compile_context>

<pallas_src>
import jax
import jax.numpy as jnp
from jax.experimental import pallas as pl
from jax.experimental.pallas import tpu as pltpu


# ------------------------------ model sizes --------------------------------

N_CHNS_1, N_CHNS_2, N_CHNS_3, N_HID = 16, 32, 64, 128
CPAD = 128           # lane-dense padded width for the final logits GEMM
_TILE_G = 512        # pool-groups / batch rows per grid step
_VMEM_LIMIT = 32 * 1024 * 1024


def _round_up(x, m):
    return (x + m - 1) // m * m


# ----------------------------- Pallas kernels ------------------------------

def _conv_pool_kernel(x_ref, w_ref, b_ref, o_ref):
    """Fused conv-GEMM + max-pool + bias + ReLU, bf16 store.

    x: [P, tg, K] bf16   (P = pool*pool window positions, tg pool groups)
    w: [K, N]     bf16   (N = real output channel count)
    b: [1, N]     f32
    o: [tg, N]    bf16   (pooled, ReLU'd conv output)
    """
    P, tg, K = x_ref.shape
    N = w_ref.shape[1]
    # One stacked MXU push over all pool positions (leading-dim collapse is
    # layout-free because tg is a multiple of 16), then an elementwise max
    # over the P row-slabs.  Pool-max commutes with the per-channel bias add
    # and the monotone ReLU, so the epilogue runs once on the pooled scores.
    x = x_ref[...].reshape(P * tg, K)
    acc = jnp.dot(x, w_ref[...], preferred_element_type=jnp.float32)
    acc = acc.reshape(P, tg, N).max(axis=0)
    o_ref[...] = jnp.maximum(acc + b_ref[...], 0.0).astype(o_ref.dtype)


def _conv3_mlp_kernel(x_ref, w3_ref, b3_ref, w1_ref, b1_ref, w2_ref, b2_ref,
                      o_ref):
    """Fused conv3-GEMM + pool + ReLU + Linear(64,128) + ReLU + Linear(128,2).

    x:  [P, tb, 128] bf16  (P = 9 pool positions, tb batch rows, K = 2*2*32)
    w3: [128, 64] bf16, b3: [1, 64] f32
    w1: [64, 128] bf16, b1: [1, 128] f32
    w2: [128, 128] bf16 (2 real cols), b2: [1, 128] f32
    o:  [tb, 128] f32  (logits in cols 0..1)
    Features and hidden activation never leave VMEM/vregs.
    """
    P, tb, K = x_ref.shape
    N3 = w3_ref.shape[1]
    x = x_ref[...].reshape(P * tb, K)
    acc = jnp.dot(x, w3_ref[...], preferred_element_type=jnp.float32)
    acc = acc.reshape(P, tb, N3).max(axis=0)
    feat = jnp.maximum(acc + b3_ref[...], 0.0)                 # [tb, 64] f32
    h = jnp.dot(feat.astype(jnp.bfloat16), w1_ref[...],
                preferred_element_type=jnp.float32)
    h = jnp.maximum(h + b1_ref[...], 0.0)                      # [tb, 128] f32
    out = jnp.dot(h.astype(jnp.bfloat16), w2_ref[...],
                  preferred_element_type=jnp.float32)
    o_ref[...] = out + b2_ref[...]


# ------------------------------- JAX glue ----------------------------------

def _im2col_pooled(x, *, k, pad, pool):
    """x: [B,H,W,C] -> patches [P, G, K] bf16 with pool-window positions on the
    leading axis (P = pool*pool), pool groups on axis 1 (G = B*Po*Qo) and
    K = k*k*C im2col features (dy, dx, c) on the last axis.  Only conv-output
    positions that feed a floor-mode pool window are generated."""
    if pad:
        x = jnp.pad(x, ((0, 0), (pad, pad), (pad, pad), (0, 0)))
    B, H, W, C = x.shape
    Ho, Wo = H - k + 1, W - k + 1
    Po, Qo = Ho // pool, Wo // pool
    cols = []
    for dy in range(k):
        for dx in range(k):
            cols.append(x[:, dy:dy + Ho, dx:dx + Wo, :])
    patches = jnp.concatenate(cols, axis=-1)              # [B, Ho, Wo, k*k*C]
    patches = patches[:, :Po * pool, :Qo * pool, :]       # drop pool-discarded pos
    patches = patches.reshape(B, Po, pool, Qo, pool, k * k * C)
    patches = patches.transpose(2, 4, 0, 1, 3, 5)         # [pool,pool,B,Po,Qo,K]
    patches = patches.reshape(pool * pool, B * Po * Qo, k * k * C)
    return patches.astype(jnp.bfloat16), (B, Po, Qo)


def conv_relu_pool(x, w, b, *, k, pad, pool):
    """Conv2d(k, stride=1, padding=pad) + ReLU + MaxPool2d(pool, stride=pool).

    x: [B,H,W,Cin] bf16; w: [k*k*Cin, Cout] bf16; b: [1,Cout] f32.
    Returns [B, Po, Qo, Cout] bf16.
    """
    patches, (B, Po, Qo) = _im2col_pooled(x, k=k, pad=pad, pool=pool)
    P, G, K = patches.shape
    N = w.shape[1]
    tg = min(_TILE_G, _round_up(G, 16))
    Gp = _round_up(G, tg)
    if Gp != G:
        patches = jnp.pad(patches, ((0, 0), (0, Gp - G), (0, 0)))
    out = pl.pallas_call(
        _conv_pool_kernel,
        grid=(Gp // tg,),
        in_specs=[
            pl.BlockSpec((P, tg, K), lambda i: (0, i, 0)),
            pl.BlockSpec((K, N), lambda i: (0, 0)),
            pl.BlockSpec((1, N), lambda i: (0, 0)),
        ],
        out_specs=pl.BlockSpec((tg, N), lambda i: (i, 0)),
        out_shape=jax.ShapeDtypeStruct((Gp, N), jnp.bfloat16),
        compiler_params=pltpu.CompilerParams(
            dimension_semantics=("parallel",),
            vmem_limit_bytes=_VMEM_LIMIT),
    )(patches, w, b)
    return out[:G].reshape(B, Po, Qo, N)


def conv3_classifier(h2, p):
    """Fused Conv2d(32,64,k=2,pad=1)+ReLU+MaxPool(3) + Dropout(id) +
    Linear(64,128)+ReLU + Dropout(id) + Linear(128,2), one pallas_call.

    h2: [B, 3, 3, 32] bf16 -> logits [B, 2] f32.
    """
    # TODO(synk): Dropout omitted (inference-mode identity, model.eval()).
    patches, (B, Po, Qo) = _im2col_pooled(h2, k=2, pad=1, pool=3)
    assert Po == 1 and Qo == 1
    P, G, K = patches.shape                                # [9, B, 128]
    tb = min(_TILE_G, _round_up(G, 16))
    Gp = _round_up(G, tb)
    if Gp != G:
        patches = jnp.pad(patches, ((0, 0), (0, Gp - G), (0, 0)))
    out = pl.pallas_call(
        _conv3_mlp_kernel,
        grid=(Gp // tb,),
        in_specs=[
            pl.BlockSpec((P, tb, K), lambda i: (0, i, 0)),
            pl.BlockSpec((K, N_CHNS_3), lambda i: (0, 0)),
            pl.BlockSpec((1, N_CHNS_3), lambda i: (0, 0)),
            pl.BlockSpec((N_CHNS_3, N_HID), lambda i: (0, 0)),
            pl.BlockSpec((1, N_HID), lambda i: (0, 0)),
            pl.BlockSpec((N_HID, CPAD), lambda i: (0, 0)),
            pl.BlockSpec((1, CPAD), lambda i: (0, 0)),
        ],
        out_specs=pl.BlockSpec((tb, CPAD), lambda i: (i, 0)),
        out_shape=jax.ShapeDtypeStruct((Gp, CPAD), jnp.float32),
        compiler_params=pltpu.CompilerParams(
            dimension_semantics=("parallel",),
            vmem_limit_bytes=_VMEM_LIMIT),
    )(patches, p["conv3_w"], p["conv3_b"],
      p["fc1_w"], p["fc1_b"], p["fc2_w"], p["fc2_b"])
    return out[:B, :2]


# ------------------------------ BasicNet1 ----------------------------------

def init_params(key):
    """Random init.  Conv weights are stored flat as [k*k*Cin, Cout] in
    (dy, dx, Cin) row order (i.e. torch [Cout,Cin,kh,kw] permuted to
    (kh,kw,Cin,Cout) then flattened).  Only the final fc2 is padded to 128
    output lanes (real logits in cols 0..1)."""
    ks = jax.random.split(key, 10)

    def w(k, shape, fan_in):
        return jax.random.normal(k, shape, jnp.float32) / jnp.sqrt(float(fan_in))

    def conv_w(k, kk, cin, cout):
        return w(k, (kk * kk * cin, cout), kk * kk * cin).astype(jnp.bfloat16)

    def conv_b(k, cout, fan_in):
        return w(k, (1, cout), fan_in).astype(jnp.float32)

    return {
        "conv1_w": conv_w(ks[0], 3, 2, N_CHNS_1),
        "conv1_b": conv_b(ks[1], N_CHNS_1, 3 * 3 * 2),
        "conv2_w": conv_w(ks[2], 3, N_CHNS_1, N_CHNS_2),
        "conv2_b": conv_b(ks[3], N_CHNS_2, 3 * 3 * N_CHNS_1),
        "conv3_w": conv_w(ks[4], 2, N_CHNS_2, N_CHNS_3),
        "conv3_b": conv_b(ks[5], N_CHNS_3, 2 * 2 * N_CHNS_2),
        "fc1_w": w(ks[6], (N_CHNS_3, N_HID), N_CHNS_3).astype(jnp.bfloat16),
        "fc1_b": w(ks[7], (1, N_HID), N_CHNS_3).astype(jnp.float32),
        "fc2_w": jnp.pad(w(ks[8], (N_HID, 2), N_HID),
                         ((0, 0), (0, CPAD - 2))).astype(jnp.bfloat16),
        "fc2_b": jnp.pad(w(ks[9], (1, 2), N_HID),
                         ((0, 0), (0, CPAD - 2))).astype(jnp.float32),
    }


def basicnet1_forward(x_nchw, p):
    """x_nchw: [B, 2, 14, 14] (PyTorch NCHW)  ->  logits [B, 2]."""
    x = jnp.transpose(x_nchw, (0, 2, 3, 1)).astype(jnp.bfloat16)  # NHWC
    h = conv_relu_pool(x, p["conv1_w"], p["conv1_b"], k=3, pad=0, pool=2)
    #                                                     -> [B, 6, 6, 16] bf16
    h = conv_relu_pool(h, p["conv2_w"], p["conv2_b"], k=3, pad=1, pool=2)
    #                                                     -> [B, 3, 3, 32] bf16
    return conv3_classifier(h, p)                         # -> [B, 2] f32


# --------------------------- pure-JAX reference -----------------------------

def _reference_forward(x_nchw, p):
    """Same math via XLA conv/reduce_window (same bf16 cast points)."""
    x = jnp.transpose(x_nchw, (0, 2, 3, 1)).astype(jnp.float32)

    def conv(h, w, b, k, cin, cout, pad, pool):
        wk = w[:, :cout].reshape(k, k, cin, cout)
        h = jax.lax.conv_general_dilated(
            h.astype(jnp.bfloat16), wk, (1, 1), [(pad, pad), (pad, pad)],
            dimension_numbers=("NHWC", "HWIO", "NHWC"),
            preferred_element_type=jnp.float32)
        h = jax.nn.relu(h + b[0, :cout])
        return jax.lax.reduce_window(h, -jnp.inf, jax.lax.max,
                                     (1, pool, pool, 1), (1, pool, pool, 1),
                                     "VALID")

    h = conv(x, p["conv1_w"], p["conv1_b"], 3, 2, N_CHNS_1, 0, 2)
    h = conv(h, p["conv2_w"], p["conv2_b"], 3, N_CHNS_1, N_CHNS_2, 1, 2)
    h = conv(h, p["conv3_w"], p["conv3_b"], 2, N_CHNS_2, N_CHNS_3, 1, 3)
    f = h.reshape(h.shape[0], N_CHNS_3)
    hid = jax.nn.relu(jnp.dot(f.astype(jnp.bfloat16), p["fc1_w"],
                              preferred_element_type=jnp.float32) + p["fc1_b"])
    out = jnp.dot(hid.astype(jnp.bfloat16), p["fc2_w"],
                  preferred_element_type=jnp.float32) + p["fc2_b"]
    return out[:, :2]


if __name__ == "__main__":
    key = jax.random.PRNGKey(0)
    pkey, xkey = jax.random.split(key)
    params = init_params(pkey)
    x = jax.random.normal(xkey, (2, 2, 14, 14), jnp.float32)

    fwd = jax.jit(basicnet1_forward)
    out = fwd(x, params)
    jax.block_until_ready(out)

    assert out.shape == (2, 2) and out.dtype == jnp.float32

    ref = jax.jit(_reference_forward)(x, params)
    jax.block_until_ready(ref)
    assert jnp.allclose(out, ref, atol=2e-2, rtol=2e-2), (out, ref)

    print("KERNEL_OK")
</pallas_src>

<mosaic_0001>
module attributes {stable_mosaic.version = 11 : i64} {
  func.func @_conv_pool_kernel(%arg0: i32, %arg1: memref<4x80x18xbf16, #tpu.memory_space<vmem>>, %arg2: memref<18x16xbf16, #tpu.memory_space<vmem>>, %arg3: memref<1x16xf32, #tpu.memory_space<vmem>>, %arg4: memref<80x16xbf16, #tpu.memory_space<vmem>>) attributes {dimension_semantics = [#tpu.dimension_semantics<parallel>], iteration_bounds = array<i64: 1>, scalar_prefetch = 0 : i64, scratch_operands = 0 : i64, tpu.core_type = #tpu.core_type<tc>, window_params = [{transform_indices = @transform_0, window_bounds = array<i64: 4, 80, 18>}, {pipeline_mode = #tpu.pipeline_mode<synchronous>, transform_indices = @transform_1, window_bounds = array<i64: 18, 16>}, {pipeline_mode = #tpu.pipeline_mode<synchronous>, transform_indices = @transform_2, window_bounds = array<i64: 1, 16>}, {transform_indices = @transform_3, window_bounds = array<i64: 80, 16>}]} {
    %c0 = arith.constant 0 : index
    %c0_0 = arith.constant 0 : index
    %c0_1 = arith.constant 0 : index
    %0 = vector.load %arg1[%c0, %c0_0, %c0_1] : memref<4x80x18xbf16, #tpu.memory_space<vmem>>, vector<4x80x18xbf16>
    %1 = vector.shape_cast %0 : vector<4x80x18xbf16> to vector<320x18xbf16>
    %c0_2 = arith.constant 0 : index
    %c0_3 = arith.constant 0 : index
    %2 = vector.load %arg2[%c0_2, %c0_3] : memref<18x16xbf16, #tpu.memory_space<vmem>>, vector<18x16xbf16>
    %cst = arith.constant dense<0.000000e+00> : vector<320x16xf32>
    %3 = tpu.matmul %1, %2, %cst {dimension_numbers = #tpu.dot_dimension_numbers<[1], [0], [0], [1], [0, 0, 1, 1], [], []>} : vector<320x18xbf16>, vector<18x16xbf16>, vector<320x16xf32> -> vector<320x16xf32>
    %4 = vector.shape_cast %3 : vector<320x16xf32> to vector<4x80x16xf32>
    %cst_4 = arith.constant dense<0xFF800000> : vector<80x16xf32>
    %5 = vector.multi_reduction <maximumf>, %4, %cst_4 [0] : vector<4x80x16xf32> to vector<80x16xf32>
    %c0_5 = arith.constant 0 : index
    %c0_6 = arith.constant 0 : index
    %6 = vector.load %arg3[%c0_5, %c0_6] : memref<1x16xf32, #tpu.memory_space<vmem>>, vector<1x16xf32>
    %7 = vector.broadcast %6 : vector<1x16xf32> to vector<80x16xf32>
    %8 = arith.addf %5, %7 : vector<80x16xf32>
    %cst_7 = arith.constant 0.000000e+00 : f32
    %9 = vector.broadcast %cst_7 : f32 to vector<80x16xf32>
    %10 = arith.maximumf %8, %9 : vector<80x16xf32>
    %11 = arith.truncf %10 : vector<80x16xf32> to vector<80x16xbf16>
    %c0_8 = arith.constant 0 : index
    %c0_9 = arith.constant 0 : index
    %12 = vector.load %arg4[%c0_8, %c0_9] : memref<80x16xbf16, #tpu.memory_space<vmem>>, vector<80x16xbf16>
    tpu.vector_store %arg4[%c0_8, %c0_9], %11 {strides = array<i32>} : memref<80x16xbf16, #tpu.memory_space<vmem>>, vector<80x16xbf16>,
    return
  }
  func.func @transform_0(%arg0: i32) -> (i32, i32, i32) {
    %c0_i32 = arith.constant 0 : i32
    %c0_i32_0 = arith.constant 0 : i32
    %c0_i32_1 = arith.constant 0 : i32
    return %c0_i32, %arg0, %c0_i32_0 : i32, i32, i32
  }
  func.func @transform_1(%arg0: i32) -> (i32, i32) {
    %c0_i32 = arith.constant 0 : i32
    %c0_i32_0 = arith.constant 0 : i32
    %c0_i32_1 = arith.constant 0 : i32
    return %c0_i32, %c0_i32_0 : i32, i32
  }
  func.func @transform_2(%arg0: i32) -> (i32, i32) {
    %c0_i32 = arith.constant 0 : i32
    %c0_i32_0 = arith.constant 0 : i32
    %c0_i32_1 = arith.constant 0 : i32
    return %c0_i32, %c0_i32_0 : i32, i32
  }
  func.func @transform_3(%arg0: i32) -> (i32, i32) {
    %c0_i32 = arith.constant 0 : i32
    %c0_i32_0 = arith.constant 0 : i32
    return %arg0, %c0_i32 : i32, i32
  }
}

module attributes {stable_mosaic.version = 11 : i64} {
  func.func @_conv_pool_kernel(%arg0: i32, %arg1: memref<4x32x144xbf16, #tpu.memory_space<vmem>>, %arg2: memref<144x32xbf16, #tpu.memory_space<vmem>>, %arg3: memref<1x32xf32, #tpu.memory_space<vmem>>, %arg4: memref<32x32xbf16, #tpu.memory_space<vmem>>) attributes {dimension_semantics = [#tpu.dimension_semantics<parallel>], iteration_bounds = array<i64: 1>, scalar_prefetch = 0 : i64, scratch_operands = 0 : i64, tpu.core_type = #tpu.core_type<tc>, window_params = [{transform_indices = @transform_0, window_bounds = array<i64: 4, 32, 144>}, {pipeline_mode = #tpu.pipeline_mode<synchronous>, transform_indices = @transform_1, window_bounds = array<i64: 144, 32>}, {pipeline_mode = #tpu.pipeline_mode<synchronous>, transform_indices = @transform_2, window_bounds = array<i64: 1, 32>}, {transform_indices = @transform_3, window_bounds = array<i64: 32, 32>}]} {
    %c0 = arith.constant 0 : index
    %c0_0 = arith.constant 0 : index
    %c0_1 = arith.constant 0 : index
    %0 = vector.load %arg1[%c0, %c0_0, %c0_1] : memref<4x32x144xbf16, #tpu.memory_space<vmem>>, vector<4x32x144xbf16>
    %1 = vector.shape_cast %0 : vector<4x32x144xbf16> to vector<128x144xbf16>
    %c0_2 = arith.constant 0 : index
    %c0_3 = arith.constant 0 : index
    %2 = vector.load %arg2[%c0_2, %c0_3] : memref<144x32xbf16, #tpu.memory_space<vmem>>, vector<144x32xbf16>
    %cst = arith.constant dense<0.000000e+00> : vector<128x32xf32>
    %3 = tpu.matmul %1, %2, %cst {dimension_numbers = #tpu.dot_dimension_numbers<[1], [0], [0], [1], [0, 0, 1, 1], [], []>} : vector<128x144xbf16>, vector<144x32xbf16>, vector<128x32xf32> -> vector<128x32xf32>
    %4 = vector.shape_cast %3 : vector<128x32xf32> to vector<4x32x32xf32>
    %cst_4 = arith.constant dense<0xFF800000> : vector<32x32xf32>
    %5 = vector.multi_reduction <maximumf>, %4, %cst_4 [0] : vector<4x32x32xf32> to vector<32x32xf32>
    %c0_5 = arith.constant 0 : index
    %c0_6 = arith.constant 0 : index
    %6 = vector.load %arg3[%c0_5, %c0_6] : memref<1x32xf32, #tpu.memory_space<vmem>>, vector<1x32xf32>
    %7 = vector.broadcast %6 : vector<1x32xf32> to vector<32x32xf32>
    %8 = arith.addf %5, %7 : vector<32x32xf32>
    %cst_7 = arith.constant 0.000000e+00 : f32
    %9 = vector.broadcast %cst_7 : f32 to vector<32x32xf32>
    %10 = arith.maximumf %8, %9 : vector<32x32xf32>
    %11 = arith.truncf %10 : vector<32x32xf32> to vector<32x32xbf16>
    %c0_8 = arith.constant 0 : index
    %c0_9 = arith.constant 0 : index
    %12 = vector.load %arg4[%c0_8, %c0_9] : memref<32x32xbf16, #tpu.memory_space<vmem>>, vector<32x32xbf16>
    tpu.vector_store %arg4[%c0_8, %c0_9], %11 {strides = array<i32>} : memref<32x32xbf16, #tpu.memory_space<vmem>>, vector<32x32xbf16>,
    return
  }
  func.func @transform_0(%arg0: i32) -> (i32, i32, i32) {
    %c0_i32 = arith.constant 0 : i32
    %c0_i32_0 = arith.constant 0 : i32
    %c0_i32_1 = arith.constant 0 : i32
    return %c0_i32, %arg0, %c0_i32_0 : i32, i32, i32
  }
  func.func @transform_1(%arg0: i32) -> (i32, i32) {
    %c0_i32 = arith.constant 0 : i32
    %c0_i32_0 = arith.constant 0 : i32
    %c0_i32_1 = arith.constant 0 : i32
    return %c0_i32, %c0_i32_0 : i32, i32
  }
  func.func @transform_2(%arg0: i32) -> (i32, i32) {
    %c0_i32 = arith.constant 0 : i32
    %c0_i32_0 = arith.constant 0 : i32
    %c0_i32_1 = arith.constant 0 : i32
    return %c0_i32, %c0_i32_0 : i32, i32
  }
  func.func @transform_3(%arg0: i32) -> (i32, i32) {
    %c0_i32 = arith.constant 0 : i32
    %c0_i32_0 = arith.constant 0 : i32
    return %arg0, %c0_i32 : i32, i32
  }
}

module attributes {stable_mosaic.version = 11 : i64} {
  func.func @_conv3_mlp_kernel(%arg0: i32, %arg1: memref<9x16x128xbf16, #tpu.memory_space<vmem>>, %arg2: memref<128x64xbf16, #tpu.memory_space<vmem>>, %arg3: memref<1x64xf32, #tpu.memory_space<vmem>>, %arg4: memref<64x128xbf16, #tpu.memory_space<vmem>>, %arg5: memref<1x128xf32, #tpu.memory_space<vmem>>, %arg6: memref<128x128xbf16, #tpu.memory_space<vmem>>, %arg7: memref<1x128xf32, #tpu.memory_space<vmem>>, %arg8: memref<16x128xf32, #tpu.memory_space<vmem>>) attributes {dimension_semantics = [#tpu.dimension_semantics<parallel>], iteration_bounds = array<i64: 1>, scalar_prefetch = 0 : i64, scratch_operands = 0 : i64, tpu.core_type = #tpu.core_type<tc>, window_params = [{transform_indices = @transform_0, window_bounds = array<i64: 9, 16, 128>}, {pipeline_mode = #tpu.pipeline_mode<synchronous>, transform_indices = @transform_1, window_bounds = array<i64: 128, 64>}, {pipeline_mode = #tpu.pipeline_mode<synchronous>, transform_indices = @transform_2, window_bounds = array<i64: 1, 64>}, {pipeline_mode = #tpu.pipeline_mode<synchronous>, transform_indices = @transform_3, window_bounds = array<i64: 64, 128>}, {pipeline_mode = #tpu.pipeline_mode<synchronous>, transform_indices = @transform_4, window_bounds = array<i64: 1, 128>}, {pipeline_mode = #tpu.pipeline_mode<synchronous>, transform_indices = @transform_5, window_bounds = array<i64: 128, 128>}, {pipeline_mode = #tpu.pipeline_mode<synchronous>, transform_indices = @transform_6, window_bounds = array<i64: 1, 128>}, {transform_indices = @transform_7, window_bounds = array<i64: 16, 128>}]} {
    %c0 = arith.constant 0 : index
    %c0_0 = arith.constant 0 : index
    %c0_1 = arith.constant 0 : index
    %0 = vector.load %arg1[%c0, %c0_0, %c0_1] : memref<9x16x128xbf16, #tpu.memory_space<vmem>>, vector<9x16x128xbf16>
    %1 = vector.shape_cast %0 : vector<9x16x128xbf16> to vector<144x128xbf16>
    %c0_2 = arith.constant 0 : index
    %c0_3 = arith.constant 0 : index
    %2 = vector.load %arg2[%c0_2, %c0_3] : memref<128x64xbf16, #tpu.memory_space<vmem>>, vector<128x64xbf16>
    %cst = arith.constant dense<0.000000e+00> : vector<144x64xf32>
    %3 = tpu.matmul %1, %2, %cst {dimension_numbers = #tpu.dot_dimension_numbers<[1], [0], [0], [1], [0, 0, 1, 1], [], []>} : vector<144x128xbf16>, vector<128x64xbf16>, vector<144x64xf32> -> vector<144x64xf32>
    %4 = vector.shape_cast %3 : vector<144x64xf32> to vector<9x16x64xf32>
    %cst_4 = arith.constant dense<0xFF800000> : vector<16x64xf32>
    %5 = vector.multi_reduction <maximumf>, %4, %cst_4 [0] : vector<9x16x64xf32> to vector<16x64xf32>
    %c0_5 = arith.constant 0 : index
    %c0_6 = arith.constant 0 : index
    %6 = vector.load %arg3[%c0_5, %c0_6] : memref<1x64xf32, #tpu.memory_space<vmem>>, vector<1x64xf32>
    %7 = vector.broadcast %6 : vector<1x64xf32> to vector<16x64xf32>
    %8 = arith.addf %5, %7 : vector<16x64xf32>
    %cst_7 = arith.constant 0.000000e+00 : f32
    %9 = vector.broadcast %cst_7 : f32 to vector<16x64xf32>
    %10 = arith.maximumf %8, %9 : vector<16x64xf32>
    %11 = arith.truncf %10 : vector<16x64xf32> to vector<16x64xbf16>
    %c0_8 = arith.constant 0 : index
    %c0_9 = arith.constant 0 : index
    %12 = vector.load %arg4[%c0_8, %c0_9] : memref<64x128xbf16, #tpu.memory_space<vmem>>, vector<64x128xbf16>
    %cst_10 = arith.constant dense<0.000000e+00> : vector<16x128xf32>
    %13 = tpu.matmul %11, %12, %cst_10 {dimension_numbers = #tpu.dot_dimension_numbers<[1], [0], [0], [1], [0, 0, 1, 1], [], []>} : vector<16x64xbf16>, vector<64x128xbf16>, vector<16x128xf32> -> vector<16x128xf32>
    %c0_11 = arith.constant 0 : index
    %c0_12 = arith.constant 0 : index
    %14 = vector.load %arg5[%c0_11, %c0_12] : memref<1x128xf32, #tpu.memory_space<vmem>>, vector<1x128xf32>
    %15 = vector.broadcast %14 : vector<1x128xf32> to vector<16x128xf32>
    %16 = arith.addf %13, %15 : vector<16x128xf32>
    %cst_13 = arith.constant 0.000000e+00 : f32
    %17 = vector.broadcast %cst_13 : f32 to vector<16x128xf32>
    %18 = arith.maximumf %16, %17 : vector<16x128xf32>
    %19 = arith.truncf %18 : vector<16x128xf32> to vector<16x128xbf16>
    %c0_14 = arith.constant 0 : index
    %c0_15 = arith.constant 0 : index
    %20 = vector.load %arg6[%c0_14, %c0_15] : memref<128x128xbf16, #tpu.memory_space<vmem>>, vector<128x128xbf16>
    %cst_16 = arith.constant dense<0.000000e+00> : vector<16x128xf32>
    %21 = tpu.matmul %19, %20, %cst_16 {dimension_numbers = #tpu.dot_dimension_numbers<[1], [0], [0], [1], [0, 0, 1, 1], [], []>} : vector<16x128xbf16>, vector<128x128xbf16>, vector<16x128xf32> -> vector<16x128xf32>
    %c0_17 = arith.constant 0 : index
    %c0_18 = arith.constant 0 : index
    %22 = vector.load %arg7[%c0_17, %c0_18] : memref<1x128xf32, #tpu.memory_space<vmem>>, vector<1x128xf32>
    %23 = vector.broadcast %22 : vector<1x128xf32> to vector<16x128xf32>
    %24 = arith.addf %21, %23 : vector<16x128xf32>
    %c0_19 = arith.constant 0 : index
    %c0_20 = arith.constant 0 : index
    %25 = vector.load %arg8[%c0_19, %c0_20] : memref<16x128xf32, #tpu.memory_space<vmem>>, vector<16x128xf32>
    tpu.vector_store %arg8[%c0_19, %c0_20], %24 {strides = array<i32>} : memref<16x128xf32, #tpu.memory_space<vmem>>, vector<16x128xf32>,
    return
  }
  func.func @transform_0(%arg0: i32) -> (i32, i32, i32) {
    %c0_i32 = arith.constant 0 : i32
    %c0_i32_0 = arith.constant 0 : i32
    %c0_i32_1 = arith.constant 0 : i32
    return %c0_i32, %arg0, %c0_i32_0 : i32, i32, i32
  }
  func.func @transform_1(%arg0: i32) -> (i32, i32) {
    %c0_i32 = arith.constant 0 : i32
    %c0_i32_0 = arith.constant 0 : i32
    %c0_i32_1 = arith.constant 0 : i32
    return %c0_i32, %c0_i32_0 : i32, i32
  }
  func.func @transform_2(%arg0: i32) -> (i32, i32) {
    %c0_i32 = arith.constant 0 : i32
    %c0_i32_0 = arith.constant 0 : i32
    %c0_i32_1 = arith.constant 0 : i32
    return %c0_i32, %c0_i32_0 : i32, i32
  }
  func.func @transform_3(%arg0: i32) -> (i32, i32) {
    %c0_i32 = arith.constant 0 : i32
    %c0_i32_0 = arith.constant 0 : i32
    %c0_i32_1 = arith.constant 0 : i32
    return %c0_i32, %c0_i32_0 : i32, i32
  }
  func.func @transform_4(%arg0: i32) -> (i32, i32) {
    %c0_i32 = arith.constant 0 : i32
    %c0_i32_0 = arith.constant 0 : i32
    %c0_i32_1 = arith.constant 0 : i32
    return %c0_i32, %c0_i32_0 : i32, i32
  }
  func.func @transform_5(%arg0: i32) -> (i32, i32) {
    %c0_i32 = arith.constant 0 : i32
    %c0_i32_0 = arith.constant 0 : i32
    %c0_i32_1 = arith.constant 0 : i32
    return %c0_i32, %c0_i32_0 : i32, i32
  }
  func.func @transform_6(%arg0: i32) -> (i32, i32) {
    %c0_i32 = arith.constant 0 : i32
    %c0_i32_0 = arith.constant 0 : i32
    %c0_i32_1 = arith.constant 0 : i32
    return %c0_i32, %c0_i32_0 : i32, i32
  }
  func.func @transform_7(%arg0: i32) -> (i32, i32) {
    %c0_i32 = arith.constant 0 : i32
    %c0_i32_0 = arith.constant 0 : i32
    return %arg0, %c0_i32 : i32, i32
  }
}

</mosaic_0001>

<llo_original>
// kernel: basicnet1_forward.3
$region0: #{basicnet1_forward.3}
  #allocation0 [shape = 'u32[]', space=smem, size = 0x4, offset = 0x4, fixed_abs, tag = 'smem constant byte address 0x4 - core index']
  #allocation1 [shape = 'u32[144,128]{1,0:T(1,128)}', space=vmem, size = 0x12000, scoped, tag = 'internal scratch']
  %s0 = inlined_call_operand.vmem [shape: bf16[4,80,18], index: 0, kind: input, shape index: {}]
  %s1 = inlined_call_operand.vmem [shape: bf16[18,16], index: 1, kind: input, shape index: {}]
  %s2 = inlined_call_operand.vmem [shape: f32[1,16], index: 2, kind: input, shape index: {}]
  %s3 = inlined_call_operand.vmem [shape: bf16[80,16], index: 3, kind: output, shape index: {}]
  %s4 = sld [smem:[#allocation0]]
  $region22: #{basicnet1_forward.3} parent=0
    _
  %s6 = ssub.s32 1, %s4
  %s7 = scalar_select 0, %s6, %s4
  // Predicated region
  $region2: #{basicnet1_forward.3} parent=0 // pred_check
    _
  $region3: #{basicnet1_forward.3} parent=0 // pred_check_branch
    %9 = sbr.rel (0) target = $region5
  $region4: #{basicnet1_forward.3} parent=0 // pred_region
    _
  $region5: #{basicnet1_forward.3} parent=0 // pred_fallthru
    _
  // Predicated region
  $region6: #{basicnet1_forward.3} parent=0 // pred_check
    _
  $region7: #{basicnet1_forward.3} parent=0 // pred_check_branch
    %11 = sbr.rel (0) target = $region9
  $region8: #{basicnet1_forward.3} parent=0 // pred_region
    _
  $region9: #{basicnet1_forward.3} parent=0 // pred_fallthru
    _
  // Predicated region
  $region10: #{basicnet1_forward.3} parent=0 // pred_check
    _
  $region11: #{basicnet1_forward.3} parent=0 // pred_check_branch
    %13 = sbr.rel (0) target = $region13
  $region12: #{basicnet1_forward.3} parent=0 // pred_region
    _
  $region13: #{basicnet1_forward.3} parent=0 // pred_fallthru
    _
  %v15 = vld [vmem:[%s0] sm:$0xf]
  %v16 = vld [vmem:[%s0 + $0x4] sm:$0xf]
  %v17 = vld [vmem:[%s0 + $0x8] sm:$0xf]
  %v18 = vld [vmem:[%s0 + $0xc] sm:$0xf]
  %v19 = vld [vmem:[%s0 + $0x10] sm:$0xf]
  %v20 = vld [vmem:[%s0 + $0x14] sm:$0xf]
  %v21 = vld [vmem:[%s0 + $0x18] sm:$0xf]
  %v22 = vld [vmem:[%s0 + $0x1c] sm:$0xf]
  %v23 = vld [vmem:[%s0 + $0x20] sm:$0xf]
  %v24 = vld [vmem:[%s0 + $0x24] sm:$0xf]
  %v25 = vld [vmem:[%s0 + $0x28] sm:$0xf]
  %v26 = vld [vmem:[%s0 + $0x2c] sm:$0xf]
  %v27 = vld [vmem:[%s0 + $0x30] sm:$0xf]
  %v28 = vld [vmem:[%s0 + $0x34] sm:$0xf]
  %v29 = vld [vmem:[%s0 + $0x38] sm:$0xf]
  %v30 = vld [vmem:[%s0 + $0x3c] sm:$0xf]
  %v31 = vld [vmem:[%s0 + $0x40] sm:$0xf]
  %v32 = vld [vmem:[%s0 + $0x44] sm:$0xf]
  %v33 = vld [vmem:[%s0 + $0x48] sm:$0xf]
  %v34 = vld [vmem:[%s0 + $0x4c] sm:$0xf]
  %v35 = vld [vmem:[%s0 + $0x50] sm:$0xf]
  %v36 = vld [vmem:[%s0 + $0x54] sm:$0xf]
  %v37 = vld [vmem:[%s0 + $0x58] sm:$0xf]
  %v38 = vld [vmem:[%s0 + $0x5c] sm:$0xf]
  %v39 = vld [vmem:[%s0 + $0x60] sm:$0xf]
  %v40 = vld [vmem:[%s0 + $0x64] sm:$0xf]
  %v41 = vld [vmem:[%s0 + $0x68] sm:$0xf]
  %v42 = vld [vmem:[%s0 + $0x6c] sm:$0xf]
  %v43 = vld [vmem:[%s0 + $0x70] sm:$0xf]
  %v44 = vld [vmem:[%s0 + $0x74] sm:$0xf]
  %v45 = vld [vmem:[%s0 + $0x78] sm:$0xf]
  %v46 = vld [vmem:[%s0 + $0x7c] sm:$0xf]
  %v47 = vld [vmem:[%s0 + $0x80] sm:$0xf]
  %v48 = vld [vmem:[%s0 + $0x84] sm:$0xf]
  %v49 = vld [vmem:[%s0 + $0x88] sm:$0xf]
  %v50 = vld [vmem:[%s0 + $0x8c] sm:$0xf]
  %v51 = vld [vmem:[%s0 + $0x90] sm:$0xf]
  %v52 = vld [vmem:[%s0 + $0x94] sm:$0xf]
  %v53 = vld [vmem:[%s0 + $0x98] sm:$0xf]
  %v54 = vld [vmem:[%s0 + $0x9c] sm:$0xf]
  %v55 = vld [vmem:[%s1] sm:$0xf]
  %v56 = vld [vmem:[%s1 + $0x4] sm:$0xf]
  %v57 = vld [vmem:[%s1 + $0x8] sm:$0x1]
  %v98 = vunpack.c.l.b16 %v15
  %v99 = vunpack.c.l.b16 %v16
  %v100 = vunpack.c.l.b16 %v17
  %v101 = vunpack.c.l.b16 %v18
  %v102 = vunpack.c.l.b16 %v19
  %v103 = vunpack.c.l.b16 %v20
  %v104 = vunpack.c.l.b16 %v21
  %v105 = vunpack.c.l.b16 %v22
  %v106 = vunpack.c.l.b16 %v23
  %v107 = vunpack.c.l.b16 %v24
  %v108 = vunpack.c.l.b16 %v25
  %v109 = vunpack.c.l.b16 %v26
  %v110 = vunpack.c.l.b16 %v27
  %v111 = vunpack.c.l.b16 %v28
  %v112 = vunpack.c.l.b16 %v29
  %v113 = vunpack.c.l.b16 %v30
  %v114 = vunpack.c.l.b16 %v31
  %v115 = vunpack.c.l.b16 %v32
  %v116 = vunpack.c.l.b16 %v33
  %v117 = vunpack.c.l.b16 %v34
  %v118 = vunpack.c.l.b16 %v35
  %v119 = vunpack.c.l.b16 %v36
  %v120 = vunpack.c.l.b16 %v37
  %v121 = vunpack.c.l.b16 %v38
  %v122 = vunpack.c.l.b16 %v39
  %v123 = vunpack.c.l.b16 %v40
  %v124 = vunpack.c.l.b16 %v41
  %v125 = vunpack.c.l.b16 %v42
  %v126 = vunpack.c.l.b16 %v43
  %v127 = vunpack.c.l.b16 %v44
  %v128 = vunpack.c.l.b16 %v45
  %v129 = vunpack.c.l.b16 %v46
  %v130 = vunpack.c.l.b16 %v47
  %v131 = vunpack.c.l.b16 %v48
  %v132 = vunpack.c.l.b16 %v49
  %v133 = vunpack.c.l.b16 %v50
  %v134 = vunpack.c.l.b16 %v51
  %v135 = vunpack.c.l.b16 %v52
  %v136 = vunpack.c.l.b16 %v53
  %v137 = vunpack.c.l.b16 %v54
  %v138 = vpack.c.b16 %v99, %v98
  %v139 = vpack.c.b16 %v101, %v100
  %v140 = vpack.c.b16 %v103, %v102
  %v141 = vpack.c.b16 %v105, %v104
  %v142 = vpack.c.b16 %v107, %v106
  %v143 = vpack.c.b16 %v109, %v108
  %v144 = vpack.c.b16 %v111, %v110
  %v145 = vpack.c.b16 %v113, %v112
  %v146 = vpack.c.b16 %v115, %v114
  %v147 = vpack.c.b16 %v117, %v116
  %v148 = vpack.c.b16 %v119, %v118
  %v149 = vpack.c.b16 %v121, %v120
  %v150 = vpack.c.b16 %v123, %v122
  %v151 = vpack.c.b16 %v125, %v124
  %v152 = vpack.c.b16 %v127, %v126
  %v153 = vpack.c.b16 %v129, %v128
  %v154 = vpack.c.b16 %v131, %v130
  %v155 = vpack.c.b16 %v133, %v132
  %v156 = vpack.c.b16 %v135, %v134
  %v157 = vpack.c.b16 %v137, %v136
  %v161 = vunpack.c.l.b16 %v55
  %v162 = vunpack.c.l.b16 %v56
  %v163 = vunpack.c.l.b16 %v57
  %v164 = vpack.c.b16 %v162, %v161
  %v165 = vpack.c.b16 %v163, %v163
  %vm167 = vcmask 146432
  %v169 = vsel %vm167, %v138, 0
  %v172 = vsel %vm167, %v139, 0
  %v175 = vsel %vm167, %v140, 0
  %v178 = vsel %vm167, %v141, 0
  %v181 = vsel %vm167, %v142, 0
  %v184 = vsel %vm167, %v143, 0
  %v187 = vsel %vm167, %v144, 0
  %v190 = vsel %vm167, %v145, 0
  %v193 = vsel %vm167, %v146, 0
  %v196 = vsel %vm167, %v147, 0
  %v199 = vsel %vm167, %v148, 0
  %v202 = vsel %vm167, %v149, 0
  %v205 = vsel %vm167, %v150, 0
  %v208 = vsel %vm167, %v151, 0
  %v211 = vsel %vm167, %v152, 0
  %v214 = vsel %vm167, %v153, 0
  %v217 = vsel %vm167, %v154, 0
  %v220 = vsel %vm167, %v155, 0
  %v223 = vsel %vm167, %v156, 0
  %v226 = vsel %vm167, %v157, 0
  %vm228 = vcmask 1040384
  %v230 = vsel %vm228, %v165, 0
  %232 = vmatprep.subr.bf16.mxu0 0
  %233 = vmatpush1.bf16.msra.mxu0 %v164
  %234 = vmatprep.subr.bf16.mxu0 0
  %235 = vmatpush1.bf16.msra.mxu0 %v230
  %236 = vmatprep.subr.bf16.mxu0 0
  %237 = vmatpush1.bf16.msra.mxu0 0
  %238 = vmatprep.subr.bf16.mxu0 0
  %239 = vmatpush1.bf16.msra.mxu0 0
  %240 = vmatprep.subr.bf16.mxu0 0
  %241 = vmatpush1.bf16.msra.mxu0 0
  %242 = vmatprep.subr.bf16.mxu0 0
  %243 = vmatpush1.bf16.msra.mxu0 0
  %244 = vmatprep.subr.bf16.mxu0 0
  %245 = vmatpush1.bf16.msra.mxu0 0
  %246 = vmatprep.subr.bf16.mxu0 0
  %247 = vmatpush1.bf16.msra.mxu0 0
  %248 = vmatprep.subr.bf16.mxu0 0
  %249 = vmatpush1.bf16.msra.mxu0 0
  %250 = vmatprep.subr.bf16.mxu0 0
  %251 = vmatpush1.bf16.msra.mxu0 0
  %252 = vmatprep.subr.bf16.mxu0 0
  %253 = vmatpush1.bf16.msra.mxu0 0
  %254 = vmatprep.subr.bf16.mxu0 0
  %255 = vmatpush1.bf16.msra.mxu0 0
  %256 = vmatprep.subr.bf16.mxu0 0
  %257 = vmatpush1.bf16.msra.mxu0 0
  %258 = vmatprep.subr.bf16.mxu0 0
  %259 = vmatpush1.bf16.msra.mxu0 0
  %260 = vmatprep.subr.bf16.mxu0 0
  %261 = vmatpush1.bf16.msra.mxu0 0
  %262 = vmatprep.subr.bf16.mxu0 0
  %263 = vmatpush1.bf16.msra.mxu0 0
  %264 = vmatprep.mubr.bf16.mxu0 0
  %265 = vmatmul.mubr.bf16.gmra.mrb[0].mxu0 %v169
  %v266 = vpop.f32.mrb[0].mxu0
  %v267 = vadd.f32 0.0, %v266
  %v268 = vpop.f32.mrb[0].mxu0
  %v269 = vpop.f32.mrb[0].mxu0
  %v270 = vadd.f32 0.0, %v269
  %v271 = vpop.f32.mrb[0].mxu0
  %272 = vmatprep.mubr.bf16.mxu0 0
  %273 = vmatmul.mubr.bf16.gmra.mrb[0].mxu0 %v172
  %v274 = vpop.f32.mrb[0].mxu0
  %v275 = vadd.f32 0.0, %v274
  %v276 = vpop.f32.mrb[0].mxu0
  %v277 = vpop.f32.mrb[0].mxu0
  %v278 = vadd.f32 0.0, %v277
  %v279 = vpop.f32.mrb[0].mxu0
  %280 = vmatprep.mubr.bf16.mxu0 0
  %281 = vmatmul.mubr.bf16.gmra.mrb[0].mxu0 %v175
  %v282 = vpop.f32.mrb[0].mxu0
  %v283 = vadd.f32 0.0, %v282
  %v284 = vpop.f32.mrb[0].mxu0
  %v285 = vpop.f32.mrb[0].mxu0
  %v286 = vadd.f32 0.0, %v285
  %v287 = vpop.f32.mrb[0].mxu0
  %288 = vmatprep.mubr.bf16.mxu0 0
  %289 = vmatmul.mubr.bf16.gmra.mrb[0].mxu0 %v178
  %v290 = vpop.f32.mrb[0].mxu0
  %v291 = vadd.f32 0.0, %v290
  %v292 = vpop.f32.mrb[0].mxu0
  %v293 = vpop.f32.mrb[0].mxu0
  %v294 = vadd.f32 0.0, %v293
  %v295 = vpop.f32.mrb[0].mxu0
  %296 = vmatprep.mubr.bf16.mxu0 0
  %297 = vmatmul.mubr.bf16.gmra.mrb[0].mxu0 %v181
  %v298 = vpop.f32.mrb[0].mxu0
  %v299 = vadd.f32 0.0, %v298
  %v300 = vpop.f32.mrb[0].mxu0
  %v301 = vpop.f32.mrb[0].mxu0
  %v302 = vadd.f32 0.0, %v301
  %v303 = vpop.f32.mrb[0].mxu0
  %304 = vmatprep.mubr.bf16.mxu0 0
  %305 = vmatmul.mubr.bf16.gmra.mrb[0].mxu0 %v184
  %v306 = vpop.f32.mrb[0].mxu0
  %v307 = vadd.f32 0.0, %v306
  %v308 = vpop.f32.mrb[0].mxu0
  %v309 = vpop.f32.mrb[0].mxu0
  %v310 = vadd.f32 0.0, %v309
  %v311 = vpop.f32.mrb[0].mxu0
  %312 = vmatprep.mubr.bf16.mxu0 0
  %313 = vmatmul.mubr.bf16.gmra.mrb[0].mxu0 %v187
  %v314 = vpop.f32.mrb[0].mxu0
  %v315 = vadd.f32 0.0, %v314
  %v316 = vpop.f32.mrb[0].mxu0
  %v317 = vpop.f32.mrb[0].mxu0
  %v318 = vadd.f32 0.0, %v317
  %v319 = vpop.f32.mrb[0].mxu0
  %320 = vmatprep.mubr.bf16.mxu0 0
  %321 = vmatmul.mubr.bf16.gmra.mrb[0].mxu0 %v190
  %v322 = vpop.f32.mrb[0].mxu0
  %v323 = vadd.f32 0.0, %v322
  %v324 = vpop.f32.mrb[0].mxu0
  %v325 = vpop.f32.mrb[0].mxu0
  %v326 = vadd.f32 0.0, %v325
  %v327 = vpop.f32.mrb[0].mxu0
  %328 = vmatprep.mubr.bf16.mxu0 0
  %329 = vmatmul.mubr.bf16.gmra.mrb[0].mxu0 %v193
  %v330 = vpop.f32.mrb[0].mxu0
  %v331 = vadd.f32 0.0, %v330
  %v332 = vpop.f32.mrb[0].mxu0
  %v333 = vpop.f32.mrb[0].mxu0
  %v334 = vadd.f32 0.0, %v333
  %v335 = vpop.f32.mrb[0].mxu0
  %336 = vmatprep.mubr.bf16.mxu0 0
  %337 = vmatmul.mubr.bf16.gmra.mrb[0].mxu0 %v196
  %v338 = vpop.f32.mrb[0].mxu0
  %v339 = vadd.f32 0.0, %v338
  %v340 = vpop.f32.mrb[0].mxu0
  %v341 = vpop.f32.mrb[0].mxu0
  %v342 = vadd.f32 0.0, %v341
  %v343 = vpop.f32.mrb[0].mxu0
  %344 = vmatprep.mubr.bf16.mxu0 0
  %345 = vmatmul.mubr.bf16.gmra.mrb[0].mxu0 %v199
  %v346 = vpop.f32.mrb[0].mxu0
  %v347 = vadd.f32 0.0, %v346
  %v348 = vpop.f32.mrb[0].mxu0
  %v349 = vpop.f32.mrb[0].mxu0
  %v350 = vadd.f32 0.0, %v349
  %v351 = vpop.f32.mrb[0].mxu0
  %352 = vmatprep.mubr.bf16.mxu0 0
  %353 = vmatmul.mubr.bf16.gmra.mrb[0].mxu0 %v202
  %v354 = vpop.f32.mrb[0].mxu0
  %v355 = vadd.f32 0.0, %v354
  %v356 = vpop.f32.mrb[0].mxu0
  %v357 = vpop.f32.mrb[0].mxu0
  %v358 = vadd.f32 0.0, %v357
  %v359 = vpop.f32.mrb[0].mxu0
  %360 = vmatprep.mubr.bf16.mxu0 0
  %361 = vmatmul.mubr.bf16.gmra.mrb[0].mxu0 %v205
  %v362 = vpop.f32.mrb[0].mxu0
  %v363 = vadd.f32 0.0, %v362
  %v364 = vpop.f32.mrb[0].mxu0
  %v365 = vpop.f32.mrb[0].mxu0
  %v366 = vadd.f32 0.0, %v365
  %v367 = vpop.f32.mrb[0].mxu0
  %368 = vmatprep.mubr.bf16.mxu0 0
  %369 = vmatmul.mubr.bf16.gmra.mrb[0].mxu0 %v208
  %v370 = vpop.f32.mrb[0].mxu0
  %v371 = vadd.f32 0.0, %v370
  %v372 = vpop.f32.mrb[0].mxu0
  %v373 = vpop.f32.mrb[0].mxu0
  %v374 = vadd.f32 0.0, %v373
  %v375 = vpop.f32.mrb[0].mxu0
  %376 = vmatprep.mubr.bf16.mxu0 0
  %377 = vmatmul.mubr.bf16.gmra.mrb[0].mxu0 %v211
  %v378 = vpop.f32.mrb[0].mxu0
  %v379 = vadd.f32 0.0, %v378
  %v380 = vpop.f32.mrb[0].mxu0
  %v381 = vpop.f32.mrb[0].mxu0
  %v382 = vadd.f32 0.0, %v381
  %v383 = vpop.f32.mrb[0].mxu0
  %384 = vmatprep.mubr.bf16.mxu0 0
  %385 = vmatmul.mubr.bf16.gmra.mrb[0].mxu0 %v214
  %v386 = vpop.f32.mrb[0].mxu0
  %v387 = vadd.f32 0.0, %v386
  %v388 = vpop.f32.mrb[0].mxu0
  %v389 = vpop.f32.mrb[0].mxu0
  %v390 = vadd.f32 0.0, %v389
  %v391 = vpop.f32.mrb[0].mxu0
  %392 = vmatprep.mubr.bf16.mxu0 0
  %393 = vmatmul.mubr.bf16.gmra.mrb[0].mxu0 %v217
  %v394 = vpop.f32.mrb[0].mxu0
  %v395 = vadd.f32 0.0, %v394
  %v396 = vpop.f32.mrb[0].mxu0
  %v397 = vpop.f32.mrb[0].mxu0
  %v398 = vadd.f32 0.0, %v397
  %v399 = vpop.f32.mrb[0].mxu0
  %400 = vmatprep.mubr.bf16.mxu0 0
  %401 = vmatmul.mubr.bf16.gmra.mrb[0].mxu0 %v220
  %v402 = vpop.f32.mrb[0].mxu0
  %v403 = vadd.f32 0.0, %v402
  %v404 = vpop.f32.mrb[0].mxu0
  %v405 = vpop.f32.mrb[0].mxu0
  %v406 = vadd.f32 0.0, %v405
  %v407 = vpop.f32.mrb[0].mxu0
  %408 = vmatprep.mubr.bf16.mxu0 0
  %409 = vmatmul.mubr.bf16.gmra.mrb[0].mxu0 %v223
  %v410 = vpop.f32.mrb[0].mxu0
  %v411 = vadd.f32 0.0, %v410
  %v412 = vpop.f32.mrb[0].mxu0
  %v413 = vpop.f32.mrb[0].mxu0
  %v414 = vadd.f32 0.0, %v413
  %v415 = vpop.f32.mrb[0].mxu0
  %416 = vmatprep.mubr.bf16.mxu0 0
  %417 = vmatmul.mubr.bf16.gmra.mrb[0].mxu0 %v226
  %v418 = vpop.f32.mrb[0].mxu0
  %v419 = vadd.f32 0.0, %v418
  %v420 = vpop.f32.mrb[0].mxu0
  %v421 = vpop.f32.mrb[0].mxu0
  %v422 = vadd.f32 0.0, %v421
  %v423 = vpop.f32.mrb[0].mxu0
  %424 = vdwg.mxu0
  %vm425 = vcmask 130048
  %v426 = vsel %vm425, %v267, -inf
  %v427 = vsel %vm425, %v307, -inf
  %v428 = vmax.f32 %v426, %v427
  %v429 = vsel %vm425, %v347, -inf
  %v430 = vmax.f32 %v428, %v429
  %v431 = vsel %vm425, %v387, -inf
  %v432 = vmax.f32 %v430, %v431
  %v433 = vsel %vm425, %v270, -inf
  %v434 = vsel %vm425, %v310, -inf
  %v435 = vmax.f32 %v433, %v434
  %v436 = vsel %vm425, %v350, -inf
  %v437 = vmax.f32 %v435, %v436
  %v438 = vsel %vm425, %v390, -inf
  %v439 = vmax.f32 %v437, %v438
  %v440 = vsel %vm425, %v275, -inf
  %v441 = vsel %vm425, %v315, -inf
  %v442 = vmax.f32 %v440, %v441
  %v443 = vsel %vm425, %v355, -inf
  %v444 = vmax.f32 %v442, %v443
  %v445 = vsel %vm425, %v395, -inf
  %v446 = vmax.f32 %v444, %v445
  %v447 = vsel %vm425, %v278, -inf
  %v448 = vsel %vm425, %v318, -inf
  %v449 = vmax.f32 %v447, %v448
  %v450 = vsel %vm425, %v358, -inf
  %v451 = vmax.f32 %v449, %v450
  %v452 = vsel %vm425, %v398, -inf
  %v453 = vmax.f32 %v451, %v452
  %v454 = vsel %vm425, %v283, -inf
  %v455 = vsel %vm425, %v323, -inf
  %v456 = vmax.f32 %v454, %v455
  %v457 = vsel %vm425, %v363, -inf
  %v458 = vmax.f32 %v456, %v457
  %v459 = vsel %vm425, %v403, -inf
  %v460 = vmax.f32 %v458, %v459
  %v461 = vsel %vm425, %v286, -inf
  %v462 = vsel %vm425, %v326, -inf
  %v463 = vmax.f32 %v461, %v462
  %v464 = vsel %vm425, %v366, -inf
  %v465 = vmax.f32 %v463, %v464
  %v466 = vsel %vm425, %v406, -inf
  %v467 = vmax.f32 %v465, %v466
  %v468 = vsel %vm425, %v291, -inf
  %v469 = vsel %vm425, %v331, -inf
  %v470 = vmax.f32 %v468, %v469
  %v471 = vsel %vm425, %v371, -inf
  %v472 = vmax.f32 %v470, %v471
  %v473 = vsel %vm425, %v411, -inf
  %v474 = vmax.f32 %v472, %v473
  %v475 = vsel %vm425, %v294, -inf
  %v476 = vsel %vm425, %v334, -inf
  %v477 = vmax.f32 %v475, %v476
  %v478 = vsel %vm425, %v374, -inf
  %v479 = vmax.f32 %v477, %v478
  %v480 = vsel %vm425, %v414, -inf
  %v481 = vmax.f32 %v479, %v480
  %v482 = vsel %vm425, %v299, -inf
  %v483 = vsel %vm425, %v339, -inf
  %v484 = vmax.f32 %v482, %v483
  %v485 = vsel %vm425, %v379, -inf
  %v486 = vmax.f32 %v484, %v485
  %v487 = vsel %vm425, %v419, -inf
  %v488 = vmax.f32 %v486, %v487
  %v489 = vsel %vm425, %v302, -inf
  %v490 = vsel %vm425, %v342, -inf
  %v491 = vmax.f32 %v489, %v490
  %v492 = vsel %vm425, %v382, -inf
  %v493 = vmax.f32 %v491, %v492
  %v494 = vsel %vm425, %v422, -inf
  %v495 = vmax.f32 %v493, %v494
  %v496 = vld [vmem:[%s2] sm:$0x1]
  %v498 = vlaneseq
  %v499 = vshrl.u32 %v498, 7
  %v500 = vsub.s32 0, %v499
  %v501 = vrot.slane %v496, %v500
  %v503 = vadd.f32 %v432, %v501
  %v504 = vadd.f32 %v439, %v501
  %v505 = vadd.f32 %v446, %v501
  %v506 = vadd.f32 %v453, %v501
  %v507 = vadd.f32 %v460, %v501
  %v508 = vadd.f32 %v467, %v501
  %v509 = vadd.f32 %v474, %v501
  %v510 = vadd.f32 %v481, %v501
  %v511 = vadd.f32 %v488, %v501
  %v512 = vadd.f32 %v495, %v501
  %v513 = vmax.f32 %v503, 0.0
  %v514 = vmax.f32 %v504, 0.0
  %v515 = vmax.f32 %v505, 0.0
  %v516 = vmax.f32 %v506, 0.0
  %v517 = vmax.f32 %v507, 0.0
  %v518 = vmax.f32 %v508, 0.0
  %v519 = vmax.f32 %v509, 0.0
  %v520 = vmax.f32 %v510, 0.0
  %v521 = vmax.f32 %v511, 0.0
  %v522 = vmax.f32 %v512, 0.0
  %v523 = vpack.c.bf16 %v514, %v513
  %v524 = vpack.c.bf16 %v516, %v515
  %v525 = vpack.c.bf16 %v518, %v517
  %v526 = vpack.c.bf16 %v520, %v519
  %v527 = vpack.c.bf16 %v522, %v521
  %v533 = vunpack.c.l.b16 %v523
  %v534 = vunpack.c.h.b16 %v523
  %v535 = vunpack.c.l.b16 %v524
  %v536 = vunpack.c.h.b16 %v524
  %v537 = vunpack.c.l.b16 %v525
  %v538 = vunpack.c.h.b16 %v525
  %v539 = vunpack.c.l.b16 %v526
  %v540 = vunpack.c.h.b16 %v526
  %v541 = vunpack.c.l.b16 %v527
  %v542 = vunpack.c.h.b16 %v527
  %v543 = vpack.c.b16 %v533, %v533
  %v544 = vpack.c.b16 %v534, %v534
  %v545 = vpack.c.b16 %v535, %v535
  %v546 = vpack.c.b16 %v536, %v536
  %v547 = vpack.c.b16 %v537, %v537
  %v548 = vpack.c.b16 %v538, %v538
  %v549 = vpack.c.b16 %v539, %v539
  %v550 = vpack.c.b16 %v540, %v540
  %v551 = vpack.c.b16 %v541, %v541
  %v552 = vpack.c.b16 %v542, %v542
  %vm563 = vcmask 125952
  %564 = vst.msk [vmem:[%s3] sm:$0xf] %vm563, %v543
  %565 = vst.msk [vmem:[%s3 + $0x4] sm:$0xf] %vm563, %v544
  %566 = vst.msk [vmem:[%s3 + $0x8] sm:$0xf] %vm563, %v545
  %567 = vst.msk [vmem:[%s3 + $0xc] sm:$0xf] %vm563, %v546
  %568 = vst.msk [vmem:[%s3 + $0x10] sm:$0xf] %vm563, %v547
  %569 = vst.msk [vmem:[%s3 + $0x14] sm:$0xf] %vm563, %v548
  %570 = vst.msk [vmem:[%s3 + $0x18] sm:$0xf] %vm563, %v549
  %571 = vst.msk [vmem:[%s3 + $0x1c] sm:$0xf] %vm563, %v550
  %572 = vst.msk [vmem:[%s3 + $0x20] sm:$0xf] %vm563, %v551
  %573 = vst.msk [vmem:[%s3 + $0x24] sm:$0xf] %vm563, %v552
  // Predicated region
  $region14: #{basicnet1_forward.3} parent=0 // pred_check
    _
  $region15: #{basicnet1_forward.3} parent=0 // pred_check_branch
    %575 = sbr.rel (0) target = $region17
  $region16: #{basicnet1_forward.3} parent=0 // pred_region
    _
  $region17: #{basicnet1_forward.3} parent=0 // pred_fallthru
    _
  // Predicated region
  $region18: #{basicnet1_forward.3} parent=0 // pred_check
    _
  $region19: #{basicnet1_forward.3} parent=0 // pred_check_branch
    %577 = sbr.rel (0) target = $region21
  $region20: #{basicnet1_forward.3} parent=0 // pred_region
    _
  $region21: #{basicnet1_forward.3} parent=0 // pred_fallthru
    _

// kernel: basicnet1_forward.4
$region0: #{basicnet1_forward.4}
  #allocation0 [shape = 'u32[]', space=smem, size = 0x4, offset = 0x4, fixed_abs, tag = 'smem constant byte address 0x4 - core index']
  #allocation1 [shape = 'u32[144,128]{1,0:T(1,128)}', space=vmem, size = 0x12000, scoped, tag = 'internal scratch']
  %s0 = inlined_call_operand.vmem [shape: bf16[4,32,144], index: 0, kind: input, shape index: {}]
  %s1 = inlined_call_operand.vmem [shape: bf16[144,32], index: 1, kind: input, shape index: {}]
  %s2 = inlined_call_operand.vmem [shape: f32[1,32], index: 2, kind: input, shape index: {}]
  %s3 = inlined_call_operand.vmem [shape: bf16[32,32], index: 3, kind: output, shape index: {}]
  %s4 = sld [smem:[#allocation0]]
  $region22: #{basicnet1_forward.4} parent=0
    _
  %s6 = ssub.s32 1, %s4
  %s7 = scalar_select 0, %s6, %s4
  // Predicated region
  $region2: #{basicnet1_forward.4} parent=0 // pred_check
    _
  $region3: #{basicnet1_forward.4} parent=0 // pred_check_branch
    %9 = sbr.rel (0) target = $region5
  $region4: #{basicnet1_forward.4} parent=0 // pred_region
    _
  $region5: #{basicnet1_forward.4} parent=0 // pred_fallthru
    _
  // Predicated region
  $region6: #{basicnet1_forward.4} parent=0 // pred_check
    _
  $region7: #{basicnet1_forward.4} parent=0 // pred_check_branch
    %11 = sbr.rel (0) target = $region9
  $region8: #{basicnet1_forward.4} parent=0 // pred_region
    _
  $region9: #{basicnet1_forward.4} parent=0 // pred_fallthru
    _
  // Predicated region
  $region10: #{basicnet1_forward.4} parent=0 // pred_check
    _
  $region11: #{basicnet1_forward.4} parent=0 // pred_check_branch
    %13 = sbr.rel (0) target = $region13
  $region12: #{basicnet1_forward.4} parent=0 // pred_region
    _
  $region13: #{basicnet1_forward.4} parent=0 // pred_fallthru
    _
  %v15 = vld [vmem:[%s0] sm:$0xff]
  %v16 = vld [vmem:[%s0 + $0x8] sm:$0xff]
  %v17 = vld [vmem:[%s0 + $0x10] sm:$0xff]
  %v18 = vld [vmem:[%s0 + $0x18] sm:$0xff]
  %v19 = vld [vmem:[%s0 + $0x20] sm:$0xff]
  %v20 = vld [vmem:[%s0 + $0x28] sm:$0xff]
  %v21 = vld [vmem:[%s0 + $0x30] sm:$0xff]
  %v22 = vld [vmem:[%s0 + $0x38] sm:$0xff]
  %v23 = vld [vmem:[%s0 + $0x40] sm:$0xff]
  %v24 = vld [vmem:[%s0 + $0x48] sm:$0xff]
  %v25 = vld [vmem:[%s0 + $0x50] sm:$0xff]
  %v26 = vld [vmem:[%s0 + $0x58] sm:$0xff]
  %v27 = vld [vmem:[%s0 + $0x60] sm:$0xff]
  %v28 = vld [vmem:[%s0 + $0x68] sm:$0xff]
  %v29 = vld [vmem:[%s0 + $0x70] sm:$0xff]
  %v30 = vld [vmem:[%s0 + $0x78] sm:$0xff]
  %v31 = vld [vmem:[%s1] sm:$0xf]
  %v32 = vld [vmem:[%s1 + $0x4] sm:$0xf]
  %v33 = vld [vmem:[%s1 + $0x8] sm:$0xf]
  %v34 = vld [vmem:[%s1 + $0xc] sm:$0xf]
  %v35 = vld [vmem:[%s1 + $0x10] sm:$0xf]
  %v36 = vld [vmem:[%s1 + $0x14] sm:$0xf]
  %v37 = vld [vmem:[%s1 + $0x18] sm:$0xf]
  %v38 = vld [vmem:[%s1 + $0x1c] sm:$0xf]
  %v39 = vld [vmem:[%s1 + $0x20] sm:$0xf]
  %v40 = vld [vmem:[%s1 + $0x24] sm:$0xf]
  %v41 = vld [vmem:[%s1 + $0x28] sm:$0xf]
  %v42 = vld [vmem:[%s1 + $0x2c] sm:$0xf]
  %v43 = vld [vmem:[%s1 + $0x30] sm:$0xf]
  %v44 = vld [vmem:[%s1 + $0x34] sm:$0xf]
  %v45 = vld [vmem:[%s1 + $0x38] sm:$0xf]
  %v46 = vld [vmem:[%s1 + $0x3c] sm:$0xf]
  %v47 = vld [vmem:[%s1 + $0x40] sm:$0xf]
  %v48 = vld [vmem:[%s1 + $0x44] sm:$0xf]
  %v65 = vunpack.c.l.b16 %v15
  %v66 = vunpack.c.h.b16 %v15
  %v67 = vunpack.c.l.b16 %v16
  %v68 = vunpack.c.h.b16 %v16
  %v69 = vunpack.c.l.b16 %v17
  %v70 = vunpack.c.h.b16 %v17
  %v71 = vunpack.c.l.b16 %v18
  %v72 = vunpack.c.h.b16 %v18
  %v73 = vunpack.c.l.b16 %v19
  %v74 = vunpack.c.h.b16 %v19
  %v75 = vunpack.c.l.b16 %v20
  %v76 = vunpack.c.h.b16 %v20
  %v77 = vunpack.c.l.b16 %v21
  %v78 = vunpack.c.h.b16 %v21
  %v79 = vunpack.c.l.b16 %v22
  %v80 = vunpack.c.h.b16 %v22
  %v81 = vunpack.c.l.b16 %v23
  %v82 = vunpack.c.h.b16 %v23
  %v83 = vunpack.c.l.b16 %v24
  %v84 = vunpack.c.h.b16 %v24
  %v85 = vunpack.c.l.b16 %v25
  %v86 = vunpack.c.h.b16 %v25
  %v87 = vunpack.c.l.b16 %v26
  %v88 = vunpack.c.h.b16 %v26
  %v89 = vunpack.c.l.b16 %v27
  %v90 = vunpack.c.h.b16 %v27
  %v91 = vunpack.c.l.b16 %v28
  %v92 = vunpack.c.h.b16 %v28
  %v93 = vunpack.c.l.b16 %v29
  %v94 = vunpack.c.h.b16 %v29
  %v95 = vunpack.c.l.b16 %v30
  %v96 = vunpack.c.h.b16 %v30
  %v97 = vpack.c.b16 %v67, %v65
  %v98 = vpack.c.b16 %v68, %v66
  %v99 = vpack.c.b16 %v71, %v69
  %v100 = vpack.c.b16 %v72, %v70
  %v101 = vpack.c.b16 %v75, %v73
  %v102 = vpack.c.b16 %v76, %v74
  %v103 = vpack.c.b16 %v79, %v77
  %v104 = vpack.c.b16 %v80, %v78
  %v105 = vpack.c.b16 %v83, %v81
  %v106 = vpack.c.b16 %v84, %v82
  %v107 = vpack.c.b16 %v87, %v85
  %v108 = vpack.c.b16 %v88, %v86
  %v109 = vpack.c.b16 %v91, %v89
  %v110 = vpack.c.b16 %v92, %v90
  %v111 = vpack.c.b16 %v95, %v93
  %v112 = vpack.c.b16 %v96, %v94
  %v139 = vunpack.c.l.b16 %v31
  %v140 = vunpack.c.l.b16 %v32
  %v141 = vunpack.c.l.b16 %v33
  %v142 = vunpack.c.l.b16 %v34
  %v143 = vunpack.c.l.b16 %v35
  %v144 = vunpack.c.l.b16 %v36
  %v145 = vunpack.c.l.b16 %v37
  %v146 = vunpack.c.l.b16 %v38
  %v147 = vunpack.c.l.b16 %v39
  %v148 = vunpack.c.l.b16 %v40
  %v149 = vunpack.c.l.b16 %v41
  %v150 = vunpack.c.l.b16 %v42
  %v151 = vunpack.c.l.b16 %v43
  %v152 = vunpack.c.l.b16 %v44
  %v153 = vunpack.c.l.b16 %v45
  %v154 = vunpack.c.l.b16 %v46
  %v155 = vunpack.c.l.b16 %v47
  %v156 = vunpack.c.l.b16 %v48
  %v157 = vpack.c.b16 %v140, %v139
  %v158 = vpack.c.b16 %v142, %v141
  %v159 = vpack.c.b16 %v144, %v143
  %v160 = vpack.c.b16 %v146, %v145
  %v161 = vpack.c.b16 %v148, %v147
  %v162 = vpack.c.b16 %v150, %v149
  %v163 = vpack.c.b16 %v152, %v151
  %v164 = vpack.c.b16 %v154, %v153
  %v165 = vpack.c.b16 %v156, %v155
  %vm175 = vcmask 130048
  %v177 = vsel %vm175, %v98, 0
  %v180 = vsel %vm175, %v100, 0
  %v183 = vsel %vm175, %v102, 0
  %v186 = vsel %vm175, %v104, 0
  %v189 = vsel %vm175, %v106, 0
  %v192 = vsel %vm175, %v108, 0
  %v195 = vsel %vm175, %v110, 0
  %v198 = vsel %vm175, %v112, 0
  %200 = vmatprep.subr.bf16.mxu0 0
  %201 = vmatpush1.bf16.msra.mxu0 %v157
  %202 = vmatprep.subr.bf16.mxu0 0
  %203 = vmatpush1.bf16.msra.mxu0 %v158
  %204 = vmatprep.subr.bf16.mxu0 0
  %205 = vmatpush1.bf16.msra.mxu0 %v159
  %206 = vmatprep.subr.bf16.mxu0 0
  %207 = vmatpush1.bf16.msra.mxu0 %v160
  %208 = vmatprep.subr.bf16.mxu0 0
  %209 = vmatpush1.bf16.msra.mxu0 %v161
  %210 = vmatprep.subr.bf16.mxu0 0
  %211 = vmatpush1.bf16.msra.mxu0 %v162
  %212 = vmatprep.subr.bf16.mxu0 0
  %213 = vmatpush1.bf16.msra.mxu0 %v163
  %214 = vmatprep.subr.bf16.mxu0 0
  %215 = vmatpush1.bf16.msra.mxu0 %v164
  %216 = vmatprep.subr.bf16.mxu0 0
  %217 = vmatpush1.bf16.msra.mxu0 %v165
  %218 = vmatprep.subr.bf16.mxu0 0
  %219 = vmatpush1.bf16.msra.mxu0 0
  %220 = vmatprep.subr.bf16.mxu0 0
  %221 = vmatpush1.bf16.msra.mxu0 0
  %222 = vmatprep.subr.bf16.mxu0 0
  %223 = vmatpush1.bf16.msra.mxu0 0
  %224 = vmatprep.subr.bf16.mxu0 0
  %225 = vmatpush1.bf16.msra.mxu0 0
  %226 = vmatprep.subr.bf16.mxu0 0
  %227 = vmatpush1.bf16.msra.mxu0 0
  %228 = vmatprep.subr.bf16.mxu0 0
  %229 = vmatpush1.bf16.msra.mxu0 0
  %230 = vmatprep.subr.bf16.mxu0 0
  %231 = vmatpush1.bf16.msra.mxu0 0
  %232 = vmatprep.mubr.bf16.mxu0 %v177
  %233 = vmatmul.mubr.bf16.gmra.mrb[0].mxu0 %v97
  %v234 = vpop.f32.mrb[0].mxu0
  %v235 = vadd.f32 0.0, %v234
  %v236 = vpop.f32.mrb[0].mxu0
  %v237 = vpop.f32.mrb[0].mxu0
  %v238 = vadd.f32 0.0, %v237
  %v239 = vpop.f32.mrb[0].mxu0
  %240 = vmatprep.mubr.bf16.mxu0 %v180
  %241 = vmatmul.mubr.bf16.gmra.mrb[0].mxu0 %v99
  %v242 = vpop.f32.mrb[0].mxu0
  %v243 = vadd.f32 0.0, %v242
  %v244 = vpop.f32.mrb[0].mxu0
  %v245 = vpop.f32.mrb[0].mxu0
  %v246 = vadd.f32 0.0, %v245
  %v247 = vpop.f32.mrb[0].mxu0
  %248 = vmatprep.mubr.bf16.mxu0 %v183
  %249 = vmatmul.mubr.bf16.gmra.mrb[0].mxu0 %v101
  %v250 = vpop.f32.mrb[0].mxu0
  %v251 = vadd.f32 0.0, %v250
  %v252 = vpop.f32.mrb[0].mxu0
  %v253 = vpop.f32.mrb[0].mxu0
  %v254 = vadd.f32 0.0, %v253
  %v255 = vpop.f32.mrb[0].mxu0
  %256 = vmatprep.mubr.bf16.mxu0 %v186
  %257 = vmatmul.mubr.bf16.gmra.mrb[0].mxu0 %v103
  %v258 = vpop.f32.mrb[0].mxu0
  %v259 = vadd.f32 0.0, %v258
  %v260 = vpop.f32.mrb[0].mxu0
  %v261 = vpop.f32.mrb[0].mxu0
  %v262 = vadd.f32 0.0, %v261
  %v263 = vpop.f32.mrb[0].mxu0
  %264 = vmatprep.mubr.bf16.mxu0 %v189
  %265 = vmatmul.mubr.bf16.gmra.mrb[0].mxu0 %v105
  %v266 = vpop.f32.mrb[0].mxu0
  %v267 = vadd.f32 0.0, %v266
  %v268 = vpop.f32.mrb[0].mxu0
  %v269 = vpop.f32.mrb[0].mxu0
  %v270 = vadd.f32 0.0, %v269
  %v271 = vpop.f32.mrb[0].mxu0
  %272 = vmatprep.mubr.bf16.mxu0 %v192
  %273 = vmatmul.mubr.bf16.gmra.mrb[0].mxu0 %v107
  %v274 = vpop.f32.mrb[0].mxu0
  %v275 = vadd.f32 0.0, %v274
  %v276 = vpop.f32.mrb[0].mxu0
  %v277 = vpop.f32.mrb[0].mxu0
  %v278 = vadd.f32 0.0, %v277
  %v279 = vpop.f32.mrb[0].mxu0
  %280 = vmatprep.mubr.bf16.mxu0 %v195
  %281 = vmatmul.mubr.bf16.gmra.mrb[0].mxu0 %v109
  %v282 = vpop.f32.mrb[0].mxu0
  %v283 = vadd.f32 0.0, %v282
  %v284 = vpop.f32.mrb[0].mxu0
  %v285 = vpop.f32.mrb[0].mxu0
  %v286 = vadd.f32 0.0, %v285
  %v287 = vpop.f32.mrb[0].mxu0
  %288 = vmatprep.mubr.bf16.mxu0 %v198
  %289 = vmatmul.mubr.bf16.gmra.mrb[0].mxu0 %v111
  %v290 = vpop.f32.mrb[0].mxu0
  %v291 = vadd.f32 0.0, %v290
  %v292 = vpop.f32.mrb[0].mxu0
  %v293 = vpop.f32.mrb[0].mxu0
  %v294 = vadd.f32 0.0, %v293
  %v295 = vpop.f32.mrb[0].mxu0
  %296 = vdwg.mxu0
  %vm297 = vcmask 261120
  %v298 = vsel %vm297, %v235, -inf
  %v299 = vsel %vm297, %v251, -inf
  %v300 = vmax.f32 %v298, %v299
  %v301 = vsel %vm297, %v267, -inf
  %v302 = vmax.f32 %v300, %v301
  %v303 = vsel %vm297, %v283, -inf
  %v304 = vmax.f32 %v302, %v303
  %v305 = vsel %vm297, %v238, -inf
  %v306 = vsel %vm297, %v254, -inf
  %v307 = vmax.f32 %v305, %v306
  %v308 = vsel %vm297, %v270, -inf
  %v309 = vmax.f32 %v307, %v308
  %v310 = vsel %vm297, %v286, -inf
  %v311 = vmax.f32 %v309, %v310
  %v312 = vsel %vm297, %v243, -inf
  %v313 = vsel %vm297, %v259, -inf
  %v314 = vmax.f32 %v312, %v313
  %v315 = vsel %vm297, %v275, -inf
  %v316 = vmax.f32 %v314, %v315
  %v317 = vsel %vm297, %v291, -inf
  %v318 = vmax.f32 %v316, %v317
  %v319 = vsel %vm297, %v246, -inf
  %v320 = vsel %vm297, %v262, -inf
  %v321 = vmax.f32 %v319, %v320
  %v322 = vsel %vm297, %v278, -inf
  %v323 = vmax.f32 %v321, %v322
  %v324 = vsel %vm297, %v294, -inf
  %v325 = vmax.f32 %v323, %v324
  %v326 = vld [vmem:[%s2] sm:$0x1]
  %v328 = vlaneseq
  %v329 = vshrl.u32 %v328, 7
  %v330 = vsub.s32 0, %v329
  %v331 = vrot.slane %v326, %v330
  %v333 = vadd.f32 %v304, %v331
  %v334 = vadd.f32 %v311, %v331
  %v335 = vadd.f32 %v318, %v331
  %v336 = vadd.f32 %v325, %v331
  %v337 = vmax.f32 %v333, 0.0
  %v338 = vmax.f32 %v334, 0.0
  %v339 = vmax.f32 %v335, 0.0
  %v340 = vmax.f32 %v336, 0.0
  %v341 = vpack.c.bf16 %v338, %v337
  %v342 = vpack.c.bf16 %v340, %v339
  %v345 = vunpack.c.l.b16 %v341
  %v346 = vunpack.c.h.b16 %v341
  %v347 = vunpack.c.l.b16 %v342
  %v348 = vunpack.c.h.b16 %v342
  %v349 = vpack.c.b16 %v345, %v345
  %v350 = vpack.c.b16 %v346, %v346
  %v351 = vpack.c.b16 %v347, %v347
  %v352 = vpack.c.b16 %v348, %v348
  %vm357 = vcmask 257024
  %358 = vst.msk [vmem:[%s3] sm:$0xf] %vm357, %v349
  %359 = vst.msk [vmem:[%s3 + $0x4] sm:$0xf] %vm357, %v350
  %360 = vst.msk [vmem:[%s3 + $0x8] sm:$0xf] %vm357, %v351
  %361 = vst.msk [vmem:[%s3 + $0xc] sm:$0xf] %vm357, %v352
  // Predicated region
  $region14: #{basicnet1_forward.4} parent=0 // pred_check
    _
  $region15: #{basicnet1_forward.4} parent=0 // pred_check_branch
    %363 = sbr.rel (0) target = $region17
  $region16: #{basicnet1_forward.4} parent=0 // pred_region
    _
  $region17: #{basicnet1_forward.4} parent=0 // pred_fallthru
    _
  // Predicated region
  $region18: #{basicnet1_forward.4} parent=0 // pred_check
    _
  $region19: #{basicnet1_forward.4} parent=0 // pred_check_branch
    %365 = sbr.rel (0) target = $region21
  $region20: #{basicnet1_forward.4} parent=0 // pred_region
    _
  $region21: #{basicnet1_forward.4} parent=0 // pred_fallthru
    _

// kernel: basicnet1_forward.5
$region0: #{basicnet1_forward.5}
  #allocation0 [shape = 'u32[]', space=smem, size = 0x4, offset = 0x4, fixed_abs, tag = 'smem constant byte address 0x4 - core index']
  #allocation1 [shape = 'u32[144,128]{1,0:T(1,128)}', space=vmem, size = 0x12000, scoped, tag = 'internal scratch']
  %s0 = inlined_call_operand.vmem [shape: bf16[9,16,128], index: 0, kind: input, shape index: {}]
  %s1 = inlined_call_operand.vmem [shape: bf16[128,64], index: 1, kind: input, shape index: {}]
  %s2 = inlined_call_operand.vmem [shape: f32[1,64], index: 2, kind: input, shape index: {}]
  %s3 = inlined_call_operand.vmem [shape: bf16[64,128], index: 3, kind: input, shape index: {}]
  %s4 = inlined_call_operand.vmem [shape: f32[1,128], index: 4, kind: input, shape index: {}]
  %s5 = inlined_call_operand.vmem [shape: bf16[128,128], index: 5, kind: input, shape index: {}]
  %s6 = inlined_call_operand.vmem [shape: f32[1,128], index: 6, kind: input, shape index: {}]
  %s7 = inlined_call_operand.vmem [shape: f32[16,128], index: 7, kind: output, shape index: {}]
  %s8 = sld [smem:[#allocation0]]
  $region38: #{basicnet1_forward.5} parent=0
    _
  %s10 = ssub.s32 1, %s8
  %s11 = scalar_select 0, %s10, %s8
  // Predicated region
  $region2: #{basicnet1_forward.5} parent=0 // pred_check
    _
  $region3: #{basicnet1_forward.5} parent=0 // pred_check_branch
    %13 = sbr.rel (0) target = $region5
  $region4: #{basicnet1_forward.5} parent=0 // pred_region
    _
  $region5: #{basicnet1_forward.5} parent=0 // pred_fallthru
    _
  // Predicated region
  $region6: #{basicnet1_forward.5} parent=0 // pred_check
    _
  $region7: #{basicnet1_forward.5} parent=0 // pred_check_branch
    %15 = sbr.rel (0) target = $region9
  $region8: #{basicnet1_forward.5} parent=0 // pred_region
    _
  $region9: #{basicnet1_forward.5} parent=0 // pred_fallthru
    _
  // Predicated region
  $region10: #{basicnet1_forward.5} parent=0 // pred_check
    _
  $region11: #{basicnet1_forward.5} parent=0 // pred_check_branch
    %17 = sbr.rel (0) target = $region13
  $region12: #{basicnet1_forward.5} parent=0 // pred_region
    _
  $region13: #{basicnet1_forward.5} parent=0 // pred_fallthru
    _
  // Predicated region
  $region14: #{basicnet1_forward.5} parent=0 // pred_check
    _
  $region15: #{basicnet1_forward.5} parent=0 // pred_check_branch
    %19 = sbr.rel (0) target = $region17
  $region16: #{basicnet1_forward.5} parent=0 // pred_region
    _
  $region17: #{basicnet1_forward.5} parent=0 // pred_fallthru
    _
  // Predicated region
  $region18: #{basicnet1_forward.5} parent=0 // pred_check
    _
  $region19: #{basicnet1_forward.5} parent=0 // pred_check_branch
    %21 = sbr.rel (0) target = $region21
  $region20: #{basicnet1_forward.5} parent=0 // pred_region
    _
  $region21: #{basicnet1_forward.5} parent=0 // pred_fallthru
    _
  // Predicated region
  $region22: #{basicnet1_forward.5} parent=0 // pred_check
    _
  $region23: #{basicnet1_forward.5} parent=0 // pred_check_branch
    %23 = sbr.rel (0) target = $region25
  $region24: #{basicnet1_forward.5} parent=0 // pred_region
    _
  $region25: #{basicnet1_forward.5} parent=0 // pred_fallthru
    _
  // Predicated region
  $region26: #{basicnet1_forward.5} parent=0 // pred_check
    _
  $region27: #{basicnet1_forward.5} parent=0 // pred_check_branch
    %25 = sbr.rel (0) target = $region29
  $region28: #{basicnet1_forward.5} parent=0 // pred_region
    _
  $region29: #{basicnet1_forward.5} parent=0 // pred_fallthru
    _
  %v27 = vld [vmem:[%s0] sm:$0xf]
  %v28 = vld [vmem:[%s0 + $0x4] sm:$0xf]
  %v29 = vld [vmem:[%s0 + $0x8] sm:$0xf]
  %v30 = vld [vmem:[%s0 + $0xc] sm:$0xf]
  %v31 = vld [vmem:[%s0 + $0x10] sm:$0xf]
  %v32 = vld [vmem:[%s0 + $0x14] sm:$0xf]
  %v33 = vld [vmem:[%s0 + $0x18] sm:$0xf]
  %v34 = vld [vmem:[%s0 + $0x1c] sm:$0xf]
  %v35 = vld [vmem:[%s0 + $0x20] sm:$0xf]
  %v36 = vld [vmem:[%s0 + $0x24] sm:$0xf]
  %v37 = vld [vmem:[%s0 + $0x28] sm:$0xf]
  %v38 = vld [vmem:[%s0 + $0x2c] sm:$0xf]
  %v39 = vld [vmem:[%s0 + $0x30] sm:$0xf]
  %v40 = vld [vmem:[%s0 + $0x34] sm:$0xf]
  %v41 = vld [vmem:[%s0 + $0x38] sm:$0xf]
  %v42 = vld [vmem:[%s0 + $0x3c] sm:$0xf]
  %v43 = vld [vmem:[%s0 + $0x40] sm:$0xf]
  %v44 = vld [vmem:[%s0 + $0x44] sm:$0xf]
  %v45 = vld [vmem:[%s1] sm:$0xf]
  %v46 = vld [vmem:[%s1 + $0x4] sm:$0xf]
  %v47 = vld [vmem:[%s1 + $0x8] sm:$0xf]
  %v48 = vld [vmem:[%s1 + $0xc] sm:$0xf]
  %v49 = vld [vmem:[%s1 + $0x10] sm:$0xf]
  %v50 = vld [vmem:[%s1 + $0x14] sm:$0xf]
  %v51 = vld [vmem:[%s1 + $0x18] sm:$0xf]
  %v52 = vld [vmem:[%s1 + $0x1c] sm:$0xf]
  %v53 = vld [vmem:[%s1 + $0x20] sm:$0xf]
  %v54 = vld [vmem:[%s1 + $0x24] sm:$0xf]
  %v55 = vld [vmem:[%s1 + $0x28] sm:$0xf]
  %v56 = vld [vmem:[%s1 + $0x2c] sm:$0xf]
  %v57 = vld [vmem:[%s1 + $0x30] sm:$0xf]
  %v58 = vld [vmem:[%s1 + $0x34] sm:$0xf]
  %v59 = vld [vmem:[%s1 + $0x38] sm:$0xf]
  %v60 = vld [vmem:[%s1 + $0x3c] sm:$0xf]
  %v79 = vunpack.c.l.b16 %v27
  %v80 = vunpack.c.l.b16 %v28
  %v81 = vunpack.c.l.b16 %v29
  %v82 = vunpack.c.l.b16 %v30
  %v83 = vunpack.c.l.b16 %v31
  %v84 = vunpack.c.l.b16 %v32
  %v85 = vunpack.c.l.b16 %v33
  %v86 = vunpack.c.l.b16 %v34
  %v87 = vunpack.c.l.b16 %v35
  %v88 = vunpack.c.l.b16 %v36
  %v89 = vunpack.c.l.b16 %v37
  %v90 = vunpack.c.l.b16 %v38
  %v91 = vunpack.c.l.b16 %v39
  %v92 = vunpack.c.l.b16 %v40
  %v93 = vunpack.c.l.b16 %v41
  %v94 = vunpack.c.l.b16 %v42
  %v95 = vunpack.c.l.b16 %v43
  %v96 = vunpack.c.l.b16 %v44
  %v97 = vpack.c.b16 %v80, %v79
  %v98 = vpack.c.b16 %v82, %v81
  %v99 = vpack.c.b16 %v84, %v83
  %v100 = vpack.c.b16 %v86, %v85
  %v101 = vpack.c.b16 %v88, %v87
  %v102 = vpack.c.b16 %v90, %v89
  %v103 = vpack.c.b16 %v92, %v91
  %v104 = vpack.c.b16 %v94, %v93
  %v105 = vpack.c.b16 %v96, %v95
  %v131 = vunpack.c.l.b16 %v45
  %v132 = vunpack.c.l.b16 %v46
  %v133 = vunpack.c.l.b16 %v47
  %v134 = vunpack.c.l.b16 %v48
  %v135 = vunpack.c.l.b16 %v49
  %v136 = vunpack.c.l.b16 %v50
  %v137 = vunpack.c.l.b16 %v51
  %v138 = vunpack.c.l.b16 %v52
  %v139 = vunpack.c.l.b16 %v53
  %v140 = vunpack.c.l.b16 %v54
  %v141 = vunpack.c.l.b16 %v55
  %v142 = vunpack.c.l.b16 %v56
  %v143 = vunpack.c.l.b16 %v57
  %v144 = vunpack.c.l.b16 %v58
  %v145 = vunpack.c.l.b16 %v59
  %v146 = vunpack.c.l.b16 %v60
  %v147 = vpack.c.b16 %v132, %v131
  %v148 = vpack.c.b16 %v134, %v133
  %v149 = vpack.c.b16 %v136, %v135
  %v150 = vpack.c.b16 %v138, %v137
  %v151 = vpack.c.b16 %v140, %v139
  %v152 = vpack.c.b16 %v142, %v141
  %v153 = vpack.c.b16 %v144, %v143
  %v154 = vpack.c.b16 %v146, %v145
  %163 = vmatprep.subr.bf16.mxu0 0
  %164 = vmatpush1.bf16.msra.mxu0 %v147
  %165 = vmatprep.subr.bf16.mxu0 0
  %166 = vmatpush1.bf16.msra.mxu0 %v148
  %167 = vmatprep.subr.bf16.mxu0 0
  %168 = vmatpush1.bf16.msra.mxu0 %v149
  %169 = vmatprep.subr.bf16.mxu0 0
  %170 = vmatpush1.bf16.msra.mxu0 %v150
  %171 = vmatprep.subr.bf16.mxu0 0
  %172 = vmatpush1.bf16.msra.mxu0 %v151
  %173 = vmatprep.subr.bf16.mxu0 0
  %174 = vmatpush1.bf16.msra.mxu0 %v152
  %175 = vmatprep.subr.bf16.mxu0 0
  %176 = vmatpush1.bf16.msra.mxu0 %v153
  %177 = vmatprep.subr.bf16.mxu0 0
  %178 = vmatpush1.bf16.msra.mxu0 %v154
  %179 = vmatprep.subr.bf16.mxu0 0
  %180 = vmatpush1.bf16.msra.mxu0 0
  %181 = vmatprep.subr.bf16.mxu0 0
  %182 = vmatpush1.bf16.msra.mxu0 0
  %183 = vmatprep.subr.bf16.mxu0 0
  %184 = vmatpush1.bf16.msra.mxu0 0
  %185 = vmatprep.subr.bf16.mxu0 0
  %186 = vmatpush1.bf16.msra.mxu0 0
  %187 = vmatprep.subr.bf16.mxu0 0
  %188 = vmatpush1.bf16.msra.mxu0 0
  %189 = vmatprep.subr.bf16.mxu0 0
  %190 = vmatpush1.bf16.msra.mxu0 0
  %191 = vmatprep.subr.bf16.mxu0 0
  %192 = vmatpush1.bf16.msra.mxu0 0
  %193 = vmatprep.subr.bf16.mxu0 0
  %194 = vmatpush1.bf16.msra.mxu0 0
  %195 = vmatprep.mubr.bf16.mxu0 0
  %196 = vmatmul.mubr.bf16.gmra.mrb[0].mxu0 %v97
  %v197 = vpop.f32.mrb[0].mxu0
  %v198 = vadd.f32 0.0, %v197
  %v199 = vpop.f32.mrb[0].mxu0
  %v200 = vpop.f32.mrb[0].mxu0
  %v201 = vadd.f32 0.0, %v200
  %v202 = vpop.f32.mrb[0].mxu0
  %203 = vmatprep.mubr.bf16.mxu0 0
  %204 = vmatmul.mubr.bf16.gmra.mrb[0].mxu0 %v98
  %v205 = vpop.f32.mrb[0].mxu0
  %v206 = vadd.f32 0.0, %v205
  %v207 = vpop.f32.mrb[0].mxu0
  %v208 = vpop.f32.mrb[0].mxu0
  %v209 = vadd.f32 0.0, %v208
  %v210 = vpop.f32.mrb[0].mxu0
  %211 = vmatprep.mubr.bf16.mxu0 0
  %212 = vmatmul.mubr.bf16.gmra.mrb[0].mxu0 %v99
  %v213 = vpop.f32.mrb[0].mxu0
  %v214 = vadd.f32 0.0, %v213
  %v215 = vpop.f32.mrb[0].mxu0
  %v216 = vpop.f32.mrb[0].mxu0
  %v217 = vadd.f32 0.0, %v216
  %v218 = vpop.f32.mrb[0].mxu0
  %219 = vmatprep.mubr.bf16.mxu0 0
  %220 = vmatmul.mubr.bf16.gmra.mrb[0].mxu0 %v100
  %v221 = vpop.f32.mrb[0].mxu0
  %v222 = vadd.f32 0.0, %v221
  %v223 = vpop.f32.mrb[0].mxu0
  %v224 = vpop.f32.mrb[0].mxu0
  %v225 = vadd.f32 0.0, %v224
  %v226 = vpop.f32.mrb[0].mxu0
  %227 = vmatprep.mubr.bf16.mxu0 0
  %228 = vmatmul.mubr.bf16.gmra.mrb[0].mxu0 %v101
  %v229 = vpop.f32.mrb[0].mxu0
  %v230 = vadd.f32 0.0, %v229
  %v231 = vpop.f32.mrb[0].mxu0
  %v232 = vpop.f32.mrb[0].mxu0
  %v233 = vadd.f32 0.0, %v232
  %v234 = vpop.f32.mrb[0].mxu0
  %235 = vmatprep.mubr.bf16.mxu0 0
  %236 = vmatmul.mubr.bf16.gmra.mrb[0].mxu0 %v102
  %v237 = vpop.f32.mrb[0].mxu0
  %v238 = vadd.f32 0.0, %v237
  %v239 = vpop.f32.mrb[0].mxu0
  %v240 = vpop.f32.mrb[0].mxu0
  %v241 = vadd.f32 0.0, %v240
  %v242 = vpop.f32.mrb[0].mxu0
  %243 = vmatprep.mubr.bf16.mxu0 0
  %244 = vmatmul.mubr.bf16.gmra.mrb[0].mxu0 %v103
  %v245 = vpop.f32.mrb[0].mxu0
  %v246 = vadd.f32 0.0, %v245
  %v247 = vpop.f32.mrb[0].mxu0
  %v248 = vpop.f32.mrb[0].mxu0
  %v249 = vadd.f32 0.0, %v248
  %v250 = vpop.f32.mrb[0].mxu0
  %251 = vmatprep.mubr.bf16.mxu0 0
  %252 = vmatmul.mubr.bf16.gmra.mrb[0].mxu0 %v104
  %v253 = vpop.f32.mrb[0].mxu0
  %v254 = vadd.f32 0.0, %v253
  %v255 = vpop.f32.mrb[0].mxu0
  %v256 = vpop.f32.mrb[0].mxu0
  %v257 = vadd.f32 0.0, %v256
  %v258 = vpop.f32.mrb[0].mxu0
  %259 = vmatprep.mubr.bf16.mxu0 0
  %260 = vmatmul.mubr.bf16.gmra.mrb[0].mxu0 %v105
  %v261 = vpop.f32.mrb[0].mxu0
  %v262 = vadd.f32 0.0, %v261
  %v263 = vpop.f32.mrb[0].mxu0
  %v264 = vpop.f32.mrb[0].mxu0
  %v265 = vadd.f32 0.0, %v264
  %v266 = vpop.f32.mrb[0].mxu0
  %267 = vdwg.mxu0
  %vm268 = vcmask 523264
  %v269 = vsel %vm268, %v198, -inf
  %v270 = vsel %vm268, %v206, -inf
  %v271 = vsel %vm268, %v214, -inf
  %v272 = vmax.f32 %v269, %v271
  %v273 = vsel %vm268, %v222, -inf
  %v274 = vmax.f32 %v270, %v273
  %v275 = vsel %vm268, %v230, -inf
  %v276 = vmax.f32 %v272, %v275
  %v277 = vsel %vm268, %v238, -inf
  %v278 = vmax.f32 %v274, %v277
  %v279 = vsel %vm268, %v246, -inf
  %v280 = vmax.f32 %v276, %v279
  %v281 = vsel %vm268, %v254, -inf
  %v282 = vmax.f32 %v278, %v281
  %v283 = vsel %vm268, %v262, -inf
  %v284 = vmax.f32 %v280, %v283
  %v285 = vmax.f32 %v284, %v282
  %v286 = vsel %vm268, %v201, -inf
  %v287 = vsel %vm268, %v209, -inf
  %v288 = vsel %vm268, %v217, -inf
  %v289 = vmax.f32 %v286, %v288
  %v290 = vsel %vm268, %v225, -inf
  %v291 = vmax.f32 %v287, %v290
  %v292 = vsel %vm268, %v233, -inf
  %v293 = vmax.f32 %v289, %v292
  %v294 = vsel %vm268, %v241, -inf
  %v295 = vmax.f32 %v291, %v294
  %v296 = vsel %vm268, %v249, -inf
  %v297 = vmax.f32 %v293, %v296
  %v298 = vsel %vm268, %v257, -inf
  %v299 = vmax.f32 %v295, %v298
  %v300 = vsel %vm268, %v265, -inf
  %v301 = vmax.f32 %v297, %v300
  %v302 = vmax.f32 %v301, %v299
  %v303 = vld [vmem:[%s2] sm:$0x1]
  %v305 = vlaneseq
  %v306 = vshrl.u32 %v305, 7
  %v307 = vsub.s32 0, %v306
  %v308 = vrot.slane %v303, %v307
  %v310 = vadd.f32 %v285, %v308
  %v311 = vadd.f32 %v302, %v308
  %v312 = vmax.f32 %v310, 0.0
  %v313 = vmax.f32 %v311, 0.0
  %v314 = vpack.c.bf16 %v313, %v312
  %v315 = vld [vmem:[%s3] sm:$0xf]
  %v316 = vld [vmem:[%s3 + $0x4] sm:$0xf]
  %v317 = vld [vmem:[%s3 + $0x8] sm:$0xf]
  %v318 = vld [vmem:[%s3 + $0xc] sm:$0xf]
  %v319 = vld [vmem:[%s3 + $0x10] sm:$0xf]
  %v320 = vld [vmem:[%s3 + $0x14] sm:$0xf]
  %v321 = vld [vmem:[%s3 + $0x18] sm:$0xf]
  %v322 = vld [vmem:[%s3 + $0x1c] sm:$0xf]
  %v323 = vld [vmem:[%s4] sm:$0x1]
  %v325 = vlaneseq
  %v326 = vshrl.u32 %v325, 7
  %v327 = vsub.s32 0, %v326
  %v328 = vrot.slane %v323, %v327
  %v338 = vunpack.c.l.b16 %v315
  %v339 = vunpack.c.l.b16 %v316
  %v340 = vunpack.c.l.b16 %v317
  %v341 = vunpack.c.l.b16 %v318
  %v342 = vunpack.c.l.b16 %v319
  %v343 = vunpack.c.l.b16 %v320
  %v344 = vunpack.c.l.b16 %v321
  %v345 = vunpack.c.l.b16 %v322
  %v346 = vpack.c.b16 %v339, %v338
  %v347 = vpack.c.b16 %v341, %v340
  %v348 = vpack.c.b16 %v343, %v342
  %v349 = vpack.c.b16 %v345, %v344
  %v355 = vsel %vm268, %v314, 0
  %357 = vmatprep.subr.bf16.mxu0 0
  %358 = vmatpush1.bf16.msra.mxu0 %v346
  %359 = vmatprep.subr.bf16.mxu0 0
  %360 = vmatpush1.bf16.msra.mxu0 %v347
  %361 = vmatprep.subr.bf16.mxu0 0
  %362 = vmatpush1.bf16.msra.mxu0 %v348
  %363 = vmatprep.subr.bf16.mxu0 0
  %364 = vmatpush1.bf16.msra.mxu0 %v349
  %365 = vmatprep.subr.bf16.mxu0 0
  %366 = vmatpush1.bf16.msra.mxu0 0
  %367 = vmatprep.subr.bf16.mxu0 0
  %368 = vmatpush1.bf16.msra.mxu0 0
  %369 = vmatprep.subr.bf16.mxu0 0
  %370 = vmatpush1.bf16.msra.mxu0 0
  %371 = vmatprep.subr.bf16.mxu0 0
  %372 = vmatpush1.bf16.msra.mxu0 0
  %373 = vmatprep.subr.bf16.mxu0 0
  %374 = vmatpush1.bf16.msra.mxu0 0
  %375 = vmatprep.subr.bf16.mxu0 0
  %376 = vmatpush1.bf16.msra.mxu0 0
  %377 = vmatprep.subr.bf16.mxu0 0
  %378 = vmatpush1.bf16.msra.mxu0 0
  %379 = vmatprep.subr.bf16.mxu0 0
  %380 = vmatpush1.bf16.msra.mxu0 0
  %381 = vmatprep.subr.bf16.mxu0 0
  %382 = vmatpush1.bf16.msra.mxu0 0
  %383 = vmatprep.subr.bf16.mxu0 0
  %384 = vmatpush1.bf16.msra.mxu0 0
  %385 = vmatprep.subr.bf16.mxu0 0
  %386 = vmatpush1.bf16.msra.mxu0 0
  %387 = vmatprep.subr.bf16.mxu0 0
  %388 = vmatpush1.bf16.msra.mxu0 0
  %389 = vmatprep.mubr.bf16.mxu0 0
  %390 = vmatmul.mubr.bf16.gmra.mrb[0].mxu0 %v355
  %v391 = vpop.f32.mrb[0].mxu0
  %v392 = vadd.f32 %v328, %v391
  %v393 = vpop.f32.mrb[0].mxu0
  %v394 = vpop.f32.mrb[0].mxu0
  %v395 = vadd.f32 %v328, %v394
  %v396 = vpop.f32.mrb[0].mxu0
  %397 = vdwg.mxu0
  %v398 = vmax.f32 %v392, 0.0
  %v399 = vmax.f32 %v395, 0.0
  %v400 = vpack.c.bf16 %v399, %v398
  %v401 = vld [vmem:[%s5] sm:$0xf]
  %v402 = vld [vmem:[%s5 + $0x4] sm:$0xf]
  %v403 = vld [vmem:[%s5 + $0x8] sm:$0xf]
  %v404 = vld [vmem:[%s5 + $0xc] sm:$0xf]
  %v405 = vld [vmem:[%s5 + $0x10] sm:$0xf]
  %v406 = vld [vmem:[%s5 + $0x14] sm:$0xf]
  %v407 = vld [vmem:[%s5 + $0x18] sm:$0xf]
  %v408 = vld [vmem:[%s5 + $0x1c] sm:$0xf]
  %v409 = vld [vmem:[%s5 + $0x20] sm:$0xf]
  %v410 = vld [vmem:[%s5 + $0x24] sm:$0xf]
  %v411 = vld [vmem:[%s5 + $0x28] sm:$0xf]
  %v412 = vld [vmem:[%s5 + $0x2c] sm:$0xf]
  %v413 = vld [vmem:[%s5 + $0x30] sm:$0xf]
  %v414 = vld [vmem:[%s5 + $0x34] sm:$0xf]
  %v415 = vld [vmem:[%s5 + $0x38] sm:$0xf]
  %v416 = vld [vmem:[%s5 + $0x3c] sm:$0xf]
  %v417 = vld [vmem:[%s6] sm:$0x1]
  %v419 = vlaneseq
  %v420 = vshrl.u32 %v419, 7
  %v421 = vsub.s32 0, %v420
  %v422 = vrot.slane %v417, %v421
  %v440 = vunpack.c.l.b16 %v401
  %v441 = vunpack.c.l.b16 %v402
  %v442 = vunpack.c.l.b16 %v403
  %v443 = vunpack.c.l.b16 %v404
  %v444 = vunpack.c.l.b16 %v405
  %v445 = vunpack.c.l.b16 %v406
  %v446 = vunpack.c.l.b16 %v407
  %v447 = vunpack.c.l.b16 %v408
  %v448 = vunpack.c.l.b16 %v409
  %v449 = vunpack.c.l.b16 %v410
  %v450 = vunpack.c.l.b16 %v411
  %v451 = vunpack.c.l.b16 %v412
  %v452 = vunpack.c.l.b16 %v413
  %v453 = vunpack.c.l.b16 %v414
  %v454 = vunpack.c.l.b16 %v415
  %v455 = vunpack.c.l.b16 %v416
  %v456 = vpack.c.b16 %v441, %v440
  %v457 = vpack.c.b16 %v443, %v442
  %v458 = vpack.c.b16 %v445, %v444
  %v459 = vpack.c.b16 %v447, %v446
  %v460 = vpack.c.b16 %v449, %v448
  %v461 = vpack.c.b16 %v451, %v450
  %v462 = vpack.c.b16 %v453, %v452
  %v463 = vpack.c.b16 %v455, %v454
  %472 = vmatprep.subr.bf16.mxu0 0
  %473 = vmatpush1.bf16.msra.mxu0 %v456
  %474 = vmatprep.subr.bf16.mxu0 0
  %475 = vmatpush1.bf16.msra.mxu0 %v457
  %476 = vmatprep.subr.bf16.mxu0 0
  %477 = vmatpush1.bf16.msra.mxu0 %v458
  %478 = vmatprep.subr.bf16.mxu0 0
  %479 = vmatpush1.bf16.msra.mxu0 %v459
  %480 = vmatprep.subr.bf16.mxu0 0
  %481 = vmatpush1.bf16.msra.mxu0 %v460
  %482 = vmatprep.subr.bf16.mxu0 0
  %483 = vmatpush1.bf16.msra.mxu0 %v461
  %484 = vmatprep.subr.bf16.mxu0 0
  %485 = vmatpush1.bf16.msra.mxu0 %v462
  %486 = vmatprep.subr.bf16.mxu0 0
  %487 = vmatpush1.bf16.msra.mxu0 %v463
  %488 = vmatprep.subr.bf16.mxu0 0
  %489 = vmatpush1.bf16.msra.mxu0 0
  %490 = vmatprep.subr.bf16.mxu0 0
  %491 = vmatpush1.bf16.msra.mxu0 0
  %492 = vmatprep.subr.bf16.mxu0 0
  %493 = vmatpush1.bf16.msra.mxu0 0
  %494 = vmatprep.subr.bf16.mxu0 0
  %495 = vmatpush1.bf16.msra.mxu0 0
  %496 = vmatprep.subr.bf16.mxu0 0
  %497 = vmatpush1.bf16.msra.mxu0 0
  %498 = vmatprep.subr.bf16.mxu0 0
  %499 = vmatpush1.bf16.msra.mxu0 0
  %500 = vmatprep.subr.bf16.mxu0 0
  %501 = vmatpush1.bf16.msra.mxu0 0
  %502 = vmatprep.subr.bf16.mxu0 0
  %503 = vmatpush1.bf16.msra.mxu0 0
  %504 = vmatprep.mubr.bf16.mxu0 0
  %505 = vmatmul.mubr.bf16.gmra.mrb[0].mxu0 %v400
  %v506 = vpop.f32.mrb[0].mxu0
  %v507 = vadd.f32 %v422, %v506
  %v508 = vpop.f32.mrb[0].mxu0
  %v509 = vpop.f32.mrb[0].mxu0
  %v510 = vadd.f32 %v422, %v509
  %v511 = vpop.f32.mrb[0].mxu0
  %512 = vdwg.mxu0
  %513 = vst [vmem:[%s7] sm:$0xff] %v507
  %514 = vst [vmem:[%s7 + $0x8] sm:$0xff] %v510
  // Predicated region
  $region30: #{basicnet1_forward.5} parent=0 // pred_check
    _
  $region31: #{basicnet1_forward.5} parent=0 // pred_check_branch
    %516 = sbr.rel (0) target = $region33
  $region32: #{basicnet1_forward.5} parent=0 // pred_region
    _
  $region33: #{basicnet1_forward.5} parent=0 // pred_fallthru
    _
  // Predicated region
  $region34: #{basicnet1_forward.5} parent=0 // pred_check
    _
  $region35: #{basicnet1_forward.5} parent=0 // pred_check_branch
    %518 = sbr.rel (0) target = $region37
  $region36: #{basicnet1_forward.5} parent=0 // pred_region
    _
  $region37: #{basicnet1_forward.5} parent=0 // pred_fallthru
    _

</llo_original>
